<compile_context>
chip_gen: v6e
topology: v6e:2x2x1
jax: 0.10.0
libtpu: 0.0.40
codegen_flags: <defaults>
</compile_context>

<pallas_src>
import functools

import jax
import jax.numpy as jnp
from jax.experimental import pallas as pl
from jax.experimental.pallas import tpu as pltpu


def _round_up(x, m):
    return ((x + m - 1) // m) * m


def _conv3x3_flat_kernel(x_cur_ref, x_halo_ref, w_ref, o_ref, taps_ref, *,
                         wp, tile_l, c_pad):
    # x_cur_ref:  (C_pad, tile_l)    current flat-spatial block (lanes = spatial)
    # x_halo_ref: (C_pad, halo_w)    next lanes (tap lookahead halo only)
    # w_ref:      (Cout, 9*C_pad)    tap-major (tap = ky*3 + kx) weight matrix
    # o_ref:      (Cout, tile_l)     lane-dense output tile (out dtype)
    # taps_ref:   (9*C_pad, tile_l)  VMEM scratch holding the 9 shifted taps
    for i, (ky, kx) in enumerate([(ky, kx) for ky in range(3) for kx in range(3)]):
        off = ky * wp + kx                       # static tap offset, off <= 2*wp+2
        r0 = i * c_pad
        if off == 0:
            taps_ref[r0:r0 + c_pad, :] = x_cur_ref[...]
        else:
            # One copy per tap: head from the current block, tail from the halo.
            taps_ref[r0:r0 + c_pad, 0:tile_l - off] = x_cur_ref[:, off:tile_l]
            taps_ref[r0:r0 + c_pad, tile_l - off:tile_l] = x_halo_ref[:, 0:off]
    # Single K = 9*C_pad MXU contraction; f32 accumulation, cast on store.
    o_ref[...] = jnp.dot(w_ref[...], taps_ref[...],
                         preferred_element_type=jnp.float32).astype(o_ref.dtype)


@functools.partial(jax.jit, static_argnames=("tile_l", "compute_dtype"))
def upsample_forward(x_nchw, w_oihw, *, tile_l=1024, compute_dtype=jnp.bfloat16):
    """Matches Upsample.forward for x (N, C, H, W) and conv weight (2C, C, 3, 3)."""
    N, C, H, W = x_nchw.shape
    Cout = w_oihw.shape[0]
    assert w_oihw.shape == (Cout, C, 3, 3)
    assert Cout % 4 == 0, "PixelShuffle(2) needs conv output channels divisible by 4"
    out_dtype = x_nchw.dtype

    # Odd-size pre-pad amounts (H: top, W: left), matching F.pad in forward().
    pad_t = H % 2
    pad_l = W % 2
    H += pad_t
    W += pad_l
    Hp, Wp = H + 2, W + 2

    # Channels padded to a sublane-aligned count (padded weight rows are zero).
    sub = 16 if jnp.dtype(compute_dtype).itemsize < 4 else 8
    C_pad = _round_up(C, sub)

    # Single fused prologue: dtype cast + odd-size pad + conv halo + channel pad.
    x_pad = jnp.pad(x_nchw.astype(compute_dtype),
                    ((0, 0), (0, C_pad - C), (1 + pad_t, 1), (1 + pad_l, 1)))
    x_flat = x_pad.reshape(N, C_pad, Hp * Wp)

    # Flat-conv trick: for tap (ky,kx) and flat output index j, the needed input
    # is x_flat[:, :, j + ky*Wp + kx]. Columns w in {W, W+1} of each output row
    # mix adjacent rows and are cropped after the kernel.
    halo = 2 * Wp + 2                           # largest tap offset
    halo_w = _round_up(halo, 128)               # narrow halo block width (lanes)
    tile_l = _round_up(max(tile_l, 128), halo_w)  # multiple of halo_w and 128
    ratio = tile_l // halo_w
    L = H * Wp                                  # flat output length we keep
    n_tiles = pl.cdiv(L, tile_l)
    L_alloc = n_tiles * tile_l
    P_alloc = L_alloc + halo_w                  # covers the last tile's halo block
    x_flat = jnp.pad(x_flat, ((0, 0), (0, 0), (0, P_alloc - Hp * Wp)))

    # Weight OIHW -> (Cout, 9*C_pad), tap-major: one K = 9*C_pad contraction.
    w_p = jnp.pad(w_oihw, ((0, 0), (0, C_pad - C), (0, 0), (0, 0)))
    w_mat = jnp.transpose(w_p, (0, 2, 3, 1)).reshape(Cout, 9 * C_pad).astype(compute_dtype)

    kernel = functools.partial(_conv3x3_flat_kernel, wp=Wp, tile_l=tile_l, c_pad=C_pad)

    # Explicit VMEM budget (v5e scoped default is 16 MiB, v7x physical is 64 MiB).
    in_item = jnp.dtype(compute_dtype).itemsize
    out_item = jnp.dtype(out_dtype).itemsize
    vmem_bytes = (2 * C_pad * tile_l * in_item        # current block, double-buffered
                  + 2 * C_pad * halo_w * in_item      # halo block, double-buffered
                  + 2 * Cout * 9 * C_pad * in_item    # resident weights
                  + 2 * Cout * tile_l * out_item      # output block, double-buffered
                  + 9 * C_pad * tile_l * in_item)     # taps scratch
    vmem_limit = int(min(max(2 * vmem_bytes + (2 << 20), 16 << 20), 64 << 20))

    conv_flat = pl.pallas_call(
        kernel,
        out_shape=jax.ShapeDtypeStruct((N, Cout, L_alloc), out_dtype),
        grid_spec=pltpu.PrefetchScalarGridSpec(
            num_scalar_prefetch=0,
            grid=(N, n_tiles),
            in_specs=[
                # current spatial block
                pl.BlockSpec((None, C_pad, tile_l), lambda n, t: (n, 0, t)),
                # narrow lookahead halo block starting at lane (t+1)*tile_l
                pl.BlockSpec((None, C_pad, halo_w),
                             lambda n, t: (n, 0, (t + 1) * ratio)),
                # weights: constant index_map -> DMA'd once, stays resident
                pl.BlockSpec((Cout, 9 * C_pad), lambda n, t: (0, 0)),
            ],
            out_specs=pl.BlockSpec((None, Cout, tile_l), lambda n, t: (n, 0, t)),
            scratch_shapes=[pltpu.VMEM((9 * C_pad, tile_l), compute_dtype)],
        ),
        compiler_params=pltpu.CompilerParams(
            dimension_semantics=("parallel", "parallel"),
            vmem_limit_bytes=vmem_limit),
    )(x_flat, x_flat, w_mat)

    # Crop flat-trick garbage columns / alloc tail, then PixelShuffle(2):
    # out[n, c, 2h+i, 2w+j] = conv[n, 4c + 2i + j, h, w].  Fused by XLA under jit.
    y = conv_flat[:, :, :L].reshape(N, Cout, H, Wp)[:, :, :, :W]
    Cps = Cout // 4
    y = y.reshape(N, Cps, 2, 2, H, W)
    y = jnp.transpose(y, (0, 1, 4, 2, 5, 3))
    return y.reshape(N, Cps, 2 * H, 2 * W).astype(out_dtype)


def _reference_forward(x_nchw, w_oihw):
    """Pure-JAX reference (XLA conv + pixel shuffle) for validation."""
    N, C, H, W = x_nchw.shape
    if H % 2 != 0:
        x_nchw = jnp.pad(x_nchw, ((0, 0), (0, 0), (1, 0), (0, 0)))
        H += 1
    if W % 2 != 0:
        x_nchw = jnp.pad(x_nchw, ((0, 0), (0, 0), (0, 0), (1, 0)))
        W += 1
    y = jax.lax.conv_general_dilated(
        x_nchw, w_oihw, window_strides=(1, 1), padding=((1, 1), (1, 1)),
        dimension_numbers=("NCHW", "OIHW", "NCHW"))
    Cout = w_oihw.shape[0]
    Cps = Cout // 4
    y = y.reshape(N, Cps, 2, 2, H, W)
    y = jnp.transpose(y, (0, 1, 4, 2, 5, 3))
    return y.reshape(N, Cps, 2 * H, 2 * W)


if __name__ == "__main__":
    key = jax.random.PRNGKey(0)
    kx, kw = jax.random.split(key)

    # Small shapes consistent with the module: batch=2, n_feat=4, 16x16 spatial.
    N, n_feat, H, W = 2, 4, 16, 16
    # Round test data to bf16-representable values so both the bf16-operand and
    # f32-operand paths agree with the XLA reference up to accumulation order.
    x = jax.random.normal(kx, (N, n_feat, H, W), dtype=jnp.float32)
    x = x.astype(jnp.bfloat16).astype(jnp.float32)
    w = 0.1 * jax.random.normal(kw, (2 * n_feat, n_feat, 3, 3), dtype=jnp.float32)
    w = w.astype(jnp.bfloat16).astype(jnp.float32)

    ref = jax.block_until_ready(_reference_forward(x, w))

    # Default (bf16 operands, f32 accumulation) path.
    out = jax.block_until_ready(upsample_forward(x, w))
    assert out.shape == (N, n_feat // 2, 2 * H, 2 * W), out.shape
    assert jnp.allclose(out, ref, atol=1e-3, rtol=1e-3), "bf16-operand mismatch"

    # f32 operand path.
    out_f32 = jax.block_until_ready(upsample_forward(x, w, compute_dtype=jnp.float32))
    assert jnp.allclose(out_f32, ref, atol=1e-3, rtol=1e-3), "f32-operand mismatch"

    # Odd spatial dims exercise the top/left pre-padding branch.
    x_odd = x[:, :, :15, :13]
    out_odd = jax.block_until_ready(upsample_forward(x_odd, w))
    ref_odd = jax.block_until_ready(_reference_forward(x_odd, w))
    assert out_odd.shape == ref_odd.shape, (out_odd.shape, ref_odd.shape)
    assert jnp.allclose(out_odd, ref_odd, atol=1e-3, rtol=1e-3), "odd-size mismatch"

    print("KERNEL_OK")
</pallas_src>

<mosaic_0001>
module attributes {stable_mosaic.version = 11 : i64} {
  func.func @_conv3x3_flat_kernel(%arg0: i32, %arg1: i32, %arg2: memref<1x16x1024xbf16, #tpu.memory_space<vmem>>, %arg3: memref<1x16x128xbf16, #tpu.memory_space<vmem>>, %arg4: memref<8x144xbf16, #tpu.memory_space<vmem>>, %arg5: memref<1x8x1024xf32, #tpu.memory_space<vmem>>, %arg6: memref<144x1024xbf16, #tpu.memory_space<vmem>>) attributes {dimension_semantics = [#tpu.dimension_semantics<parallel>, #tpu.dimension_semantics<parallel>], iteration_bounds = array<i64: 2, 1>, scalar_prefetch = 0 : i64, scratch_operands = 1 : i64, tpu.core_type = #tpu.core_type<tc>, window_params = [{transform_indices = @transform_0, window_bounds = array<i64: 1, 16, 1024>}, {transform_indices = @transform_1, window_bounds = array<i64: 1, 16, 128>}, {pipeline_mode = #tpu.pipeline_mode<synchronous>, transform_indices = @transform_2, window_bounds = array<i64: 8, 144>}, {transform_indices = @transform_3, window_bounds = array<i64: 1, 8, 1024>}]} {
    %c0 = arith.constant 0 : index
    %c0_0 = arith.constant 0 : index
    %c0_1 = arith.constant 0 : index
    %0 = vector.load %arg2[%c0, %c0_0, %c0_1] : memref<1x16x1024xbf16, #tpu.memory_space<vmem>>, vector<1x16x1024xbf16>
    %1 = vector.shape_cast %0 : vector<1x16x1024xbf16> to vector<16x1024xbf16>
    %c0_2 = arith.constant 0 : index
    %c0_3 = arith.constant 0 : index
    %2 = vector.load %arg6[%c0_2, %c0_3] : memref<144x1024xbf16, #tpu.memory_space<vmem>>, vector<16x1024xbf16>
    tpu.vector_store %arg6[%c0_2, %c0_3], %1 {strides = array<i32>} : memref<144x1024xbf16, #tpu.memory_space<vmem>>, vector<16x1024xbf16>,
    %c0_4 = arith.constant 0 : index
    %c0_5 = arith.constant 0 : index
    %c1 = arith.constant 1 : index
    %3 = vector.load %arg2[%c0_4, %c0_5, %c1] : memref<1x16x1024xbf16, #tpu.memory_space<vmem>>, vector<1x16x1023xbf16>
    %4 = vector.shape_cast %3 : vector<1x16x1023xbf16> to vector<16x1023xbf16>
    %c16 = arith.constant 16 : index
    %c0_6 = arith.constant 0 : index
    %5 = vector.load %arg6[%c16, %c0_6] : memref<144x1024xbf16, #tpu.memory_space<vmem>>, vector<16x1023xbf16>
    tpu.vector_store %arg6[%c16, %c0_6], %4 {strides = array<i32>} : memref<144x1024xbf16, #tpu.memory_space<vmem>>, vector<16x1023xbf16>,
    %c0_7 = arith.constant 0 : index
    %c0_8 = arith.constant 0 : index
    %c0_9 = arith.constant 0 : index
    %6 = vector.load %arg3[%c0_7, %c0_8, %c0_9] : memref<1x16x128xbf16, #tpu.memory_space<vmem>>, vector<1x16x1xbf16>
    %7 = vector.shape_cast %6 : vector<1x16x1xbf16> to vector<16x1xbf16>
    %c16_10 = arith.constant 16 : index
    %c1023 = arith.constant 1023 : index
    %8 = vector.load %arg6[%c16_10, %c1023] : memref<144x1024xbf16, #tpu.memory_space<vmem>>, vector<16x1xbf16>
    tpu.vector_store %arg6[%c16_10, %c1023], %7 {strides = array<i32>} : memref<144x1024xbf16, #tpu.memory_space<vmem>>, vector<16x1xbf16>,
    %c0_11 = arith.constant 0 : index
    %c0_12 = arith.constant 0 : index
    %c2 = arith.constant 2 : index
    %9 = vector.load %arg2[%c0_11, %c0_12, %c2] : memref<1x16x1024xbf16, #tpu.memory_space<vmem>>, vector<1x16x1022xbf16>
    %10 = vector.shape_cast %9 : vector<1x16x1022xbf16> to vector<16x1022xbf16>
    %c32 = arith.constant 32 : index
    %c0_13 = arith.constant 0 : index
    %11 = vector.load %arg6[%c32, %c0_13] : memref<144x1024xbf16, #tpu.memory_space<vmem>>, vector<16x1022xbf16>
    tpu.vector_store %arg6[%c32, %c0_13], %10 {strides = array<i32>} : memref<144x1024xbf16, #tpu.memory_space<vmem>>, vector<16x1022xbf16>,
    %c0_14 = arith.constant 0 : index
    %c0_15 = arith.constant 0 : index
    %c0_16 = arith.constant 0 : index
    %12 = vector.load %arg3[%c0_14, %c0_15, %c0_16] : memref<1x16x128xbf16, #tpu.memory_space<vmem>>, vector<1x16x2xbf16>
    %13 = vector.shape_cast %12 : vector<1x16x2xbf16> to vector<16x2xbf16>
    %c32_17 = arith.constant 32 : index
    %c1022 = arith.constant 1022 : index
    %14 = vector.load %arg6[%c32_17, %c1022] : memref<144x1024xbf16, #tpu.memory_space<vmem>>, vector<16x2xbf16>
    tpu.vector_store %arg6[%c32_17, %c1022], %13 {strides = array<i32>} : memref<144x1024xbf16, #tpu.memory_space<vmem>>, vector<16x2xbf16>,
    %c0_18 = arith.constant 0 : index
    %c0_19 = arith.constant 0 : index
    %c18 = arith.constant 18 : index
    %15 = vector.load %arg2[%c0_18, %c0_19, %c18] : memref<1x16x1024xbf16, #tpu.memory_space<vmem>>, vector<1x16x1006xbf16>
    %16 = vector.shape_cast %15 : vector<1x16x1006xbf16> to vector<16x1006xbf16>
    %c48 = arith.constant 48 : index
    %c0_20 = arith.constant 0 : index
    %17 = vector.load %arg6[%c48, %c0_20] : memref<144x1024xbf16, #tpu.memory_space<vmem>>, vector<16x1006xbf16>
    tpu.vector_store %arg6[%c48, %c0_20], %16 {strides = array<i32>} : memref<144x1024xbf16, #tpu.memory_space<vmem>>, vector<16x1006xbf16>,
    %c0_21 = arith.constant 0 : index
    %c0_22 = arith.constant 0 : index
    %c0_23 = arith.constant 0 : index
    %18 = vector.load %arg3[%c0_21, %c0_22, %c0_23] : memref<1x16x128xbf16, #tpu.memory_space<vmem>>, vector<1x16x18xbf16>
    %19 = vector.shape_cast %18 : vector<1x16x18xbf16> to vector<16x18xbf16>
    %c48_24 = arith.constant 48 : index
    %c1006 = arith.constant 1006 : index
    %20 = vector.load %arg6[%c48_24, %c1006] : memref<144x1024xbf16, #tpu.memory_space<vmem>>, vector<16x18xbf16>
    tpu.vector_store %arg6[%c48_24, %c1006], %19 {strides = array<i32>} : memref<144x1024xbf16, #tpu.memory_space<vmem>>, vector<16x18xbf16>,
    %c0_25 = arith.constant 0 : index
    %c0_26 = arith.constant 0 : index
    %c19 = arith.constant 19 : index
    %21 = vector.load %arg2[%c0_25, %c0_26, %c19] : memref<1x16x1024xbf16, #tpu.memory_space<vmem>>, vector<1x16x1005xbf16>
    %22 = vector.shape_cast %21 : vector<1x16x1005xbf16> to vector<16x1005xbf16>
    %c64 = arith.constant 64 : index
    %c0_27 = arith.constant 0 : index
    %23 = vector.load %arg6[%c64, %c0_27] : memref<144x1024xbf16, #tpu.memory_space<vmem>>, vector<16x1005xbf16>
    tpu.vector_store %arg6[%c64, %c0_27], %22 {strides = array<i32>} : memref<144x1024xbf16, #tpu.memory_space<vmem>>, vector<16x1005xbf16>,
    %c0_28 = arith.constant 0 : index
    %c0_29 = arith.constant 0 : index
    %c0_30 = arith.constant 0 : index
    %24 = vector.load %arg3[%c0_28, %c0_29, %c0_30] : memref<1x16x128xbf16, #tpu.memory_space<vmem>>, vector<1x16x19xbf16>
    %25 = vector.shape_cast %24 : vector<1x16x19xbf16> to vector<16x19xbf16>
    %c64_31 = arith.constant 64 : index
    %c1005 = arith.constant 1005 : index
    %26 = vector.load %arg6[%c64_31, %c1005] : memref<144x1024xbf16, #tpu.memory_space<vmem>>, vector<16x19xbf16>
    tpu.vector_store %arg6[%c64_31, %c1005], %25 {strides = array<i32>} : memref<144x1024xbf16, #tpu.memory_space<vmem>>, vector<16x19xbf16>,
    %c0_32 = arith.constant 0 : index
    %c0_33 = arith.constant 0 : index
    %c20 = arith.constant 20 : index
    %27 = vector.load %arg2[%c0_32, %c0_33, %c20] : memref<1x16x1024xbf16, #tpu.memory_space<vmem>>, vector<1x16x1004xbf16>
    %28 = vector.shape_cast %27 : vector<1x16x1004xbf16> to vector<16x1004xbf16>
    %c80 = arith.constant 80 : index
    %c0_34 = arith.constant 0 : index
    %29 = vector.load %arg6[%c80, %c0_34] : memref<144x1024xbf16, #tpu.memory_space<vmem>>, vector<16x1004xbf16>
    tpu.vector_store %arg6[%c80, %c0_34], %28 {strides = array<i32>} : memref<144x1024xbf16, #tpu.memory_space<vmem>>, vector<16x1004xbf16>,
    %c0_35 = arith.constant 0 : index
    %c0_36 = arith.constant 0 : index
    %c0_37 = arith.constant 0 : index
    %30 = vector.load %arg3[%c0_35, %c0_36, %c0_37] : memref<1x16x128xbf16, #tpu.memory_space<vmem>>, vector<1x16x20xbf16>
    %31 = vector.shape_cast %30 : vector<1x16x20xbf16> to vector<16x20xbf16>
    %c80_38 = arith.constant 80 : index
    %c1004 = arith.constant 1004 : index
    %32 = vector.load %arg6[%c80_38, %c1004] : memref<144x1024xbf16, #tpu.memory_space<vmem>>, vector<16x20xbf16>
    tpu.vector_store %arg6[%c80_38, %c1004], %31 {strides = array<i32>} : memref<144x1024xbf16, #tpu.memory_space<vmem>>, vector<16x20xbf16>,
    %c0_39 = arith.constant 0 : index
    %c0_40 = arith.constant 0 : index
    %c36 = arith.constant 36 : index
    %33 = vector.load %arg2[%c0_39, %c0_40, %c36] : memref<1x16x1024xbf16, #tpu.memory_space<vmem>>, vector<1x16x988xbf16>
    %34 = vector.shape_cast %33 : vector<1x16x988xbf16> to vector<16x988xbf16>
    %c96 = arith.constant 96 : index
    %c0_41 = arith.constant 0 : index
    %35 = vector.load %arg6[%c96, %c0_41] : memref<144x1024xbf16, #tpu.memory_space<vmem>>, vector<16x988xbf16>
    tpu.vector_store %arg6[%c96, %c0_41], %34 {strides = array<i32>} : memref<144x1024xbf16, #tpu.memory_space<vmem>>, vector<16x988xbf16>,
    %c0_42 = arith.constant 0 : index
    %c0_43 = arith.constant 0 : index
    %c0_44 = arith.constant 0 : index
    %36 = vector.load %arg3[%c0_42, %c0_43, %c0_44] : memref<1x16x128xbf16, #tpu.memory_space<vmem>>, vector<1x16x36xbf16>
    %37 = vector.shape_cast %36 : vector<1x16x36xbf16> to vector<16x36xbf16>
    %c96_45 = arith.constant 96 : index
    %c988 = arith.constant 988 : index
    %38 = vector.load %arg6[%c96_45, %c988] : memref<144x1024xbf16, #tpu.memory_space<vmem>>, vector<16x36xbf16>
    tpu.vector_store %arg6[%c96_45, %c988], %37 {strides = array<i32>} : memref<144x1024xbf16, #tpu.memory_space<vmem>>, vector<16x36xbf16>,
    %c0_46 = arith.constant 0 : index
    %c0_47 = arith.constant 0 : index
    %c37 = arith.constant 37 : index
    %39 = vector.load %arg2[%c0_46, %c0_47, %c37] : memref<1x16x1024xbf16, #tpu.memory_space<vmem>>, vector<1x16x987xbf16>
    %40 = vector.shape_cast %39 : vector<1x16x987xbf16> to vector<16x987xbf16>
    %c112 = arith.constant 112 : index
    %c0_48 = arith.constant 0 : index
    %41 = vector.load %arg6[%c112, %c0_48] : memref<144x1024xbf16, #tpu.memory_space<vmem>>, vector<16x987xbf16>
    tpu.vector_store %arg6[%c112, %c0_48], %40 {strides = array<i32>} : memref<144x1024xbf16, #tpu.memory_space<vmem>>, vector<16x987xbf16>,
    %c0_49 = arith.constant 0 : index
    %c0_50 = arith.constant 0 : index
    %c0_51 = arith.constant 0 : index
    %42 = vector.load %arg3[%c0_49, %c0_50, %c0_51] : memref<1x16x128xbf16, #tpu.memory_space<vmem>>, vector<1x16x37xbf16>
    %43 = vector.shape_cast %42 : vector<1x16x37xbf16> to vector<16x37xbf16>
    %c112_52 = arith.constant 112 : index
    %c987 = arith.constant 987 : index
    %44 = vector.load %arg6[%c112_52, %c987] : memref<144x1024xbf16, #tpu.memory_space<vmem>>, vector<16x37xbf16>
    tpu.vector_store %arg6[%c112_52, %c987], %43 {strides = array<i32>} : memref<144x1024xbf16, #tpu.memory_space<vmem>>, vector<16x37xbf16>,
    %c0_53 = arith.constant 0 : index
    %c0_54 = arith.constant 0 : index
    %c38 = arith.constant 38 : index
    %45 = vector.load %arg2[%c0_53, %c0_54, %c38] : memref<1x16x1024xbf16, #tpu.memory_space<vmem>>, vector<1x16x986xbf16>
    %46 = vector.shape_cast %45 : vector<1x16x986xbf16> to vector<16x986xbf16>
    %c128 = arith.constant 128 : index
    %c0_55 = arith.constant 0 : index
    %47 = vector.load %arg6[%c128, %c0_55] : memref<144x1024xbf16, #tpu.memory_space<vmem>>, vector<16x986xbf16>
    tpu.vector_store %arg6[%c128, %c0_55], %46 {strides = array<i32>} : memref<144x1024xbf16, #tpu.memory_space<vmem>>, vector<16x986xbf16>,
    %c0_56 = arith.constant 0 : index
    %c0_57 = arith.constant 0 : index
    %c0_58 = arith.constant 0 : index
    %48 = vector.load %arg3[%c0_56, %c0_57, %c0_58] : memref<1x16x128xbf16, #tpu.memory_space<vmem>>, vector<1x16x38xbf16>
    %49 = vector.shape_cast %48 : vector<1x16x38xbf16> to vector<16x38xbf16>
    %c128_59 = arith.constant 128 : index
    %c986 = arith.constant 986 : index
    %50 = vector.load %arg6[%c128_59, %c986] : memref<144x1024xbf16, #tpu.memory_space<vmem>>, vector<16x38xbf16>
    tpu.vector_store %arg6[%c128_59, %c986], %49 {strides = array<i32>} : memref<144x1024xbf16, #tpu.memory_space<vmem>>, vector<16x38xbf16>,
    %c0_60 = arith.constant 0 : index
    %c0_61 = arith.constant 0 : index
    %51 = vector.load %arg4[%c0_60, %c0_61] : memref<8x144xbf16, #tpu.memory_space<vmem>>, vector<8x144xbf16>
    %c0_62 = arith.constant 0 : index
    %c0_63 = arith.constant 0 : index
    %52 = vector.load %arg6[%c0_62, %c0_63] : memref<144x1024xbf16, #tpu.memory_space<vmem>>, vector<144x1024xbf16>
    %cst = arith.constant dense<0.000000e+00> : vector<8x1024xf32>
    %53 = tpu.matmul %51, %52, %cst {dimension_numbers = #tpu.dot_dimension_numbers<[1], [0], [0], [1], [0, 0, 1, 1], [], []>} : vector<8x144xbf16>, vector<144x1024xbf16>, vector<8x1024xf32> -> vector<8x1024xf32>
    %c0_64 = arith.constant 0 : index
    %c0_65 = arith.constant 0 : index
    %c0_66 = arith.constant 0 : index
    %54 = vector.load %arg5[%c0_64, %c0_65, %c0_66] : memref<1x8x1024xf32, #tpu.memory_space<vmem>>, vector<1x8x1024xf32>
    %55 = vector.shape_cast %54 : vector<1x8x1024xf32> to vector<8x1024xf32>
    %56 = vector.shape_cast %53 : vector<8x1024xf32> to vector<1x8x1024xf32>
    tpu.vector_store %arg5[%c0_64, %c0_65, %c0_66], %56 {strides = array<i32>} : memref<1x8x1024xf32, #tpu.memory_space<vmem>>, vector<1x8x1024xf32>,
    return
  }
  func.func @transform_0(%arg0: i32, %arg1: i32) -> (i32, i32, i32) {
    %c0_i32 = arith.constant 0 : i32
    %c0_i32_0 = arith.constant 0 : i32
    return %arg0, %c0_i32, %arg1 : i32, i32, i32
  }
  func.func @transform_1(%arg0: i32, %arg1: i32) -> (i32, i32, i32) {
    %c1_i32 = arith.constant 1 : i32
    %0 = arith.addi %arg1, %c1_i32 : i32
    %c8_i32 = arith.constant 8 : i32
    %1 = arith.muli %0, %c8_i32 : i32
    %c0_i32 = arith.constant 0 : i32
    %c0_i32_0 = arith.constant 0 : i32
    return %arg0, %c0_i32, %1 : i32, i32, i32
  }
  func.func @transform_2(%arg0: i32, %arg1: i32) -> (i32, i32) {
    %c0_i32 = arith.constant 0 : i32
    %c0_i32_0 = arith.constant 0 : i32
    %c0_i32_1 = arith.constant 0 : i32
    return %c0_i32, %c0_i32_0 : i32, i32
  }
  func.func @transform_3(%arg0: i32, %arg1: i32) -> (i32, i32, i32) {
    %c0_i32 = arith.constant 0 : i32
    %c0_i32_0 = arith.constant 0 : i32
    return %arg0, %c0_i32, %arg1 : i32, i32, i32
  }
}

</mosaic_0001>

<llo_original>
// kernel: upsample_forward.1
$region0: #{upsample_forward.1}
  #allocation0 [shape = 'u32[]', space=smem, size = 0x4, offset = 0x4, fixed_abs, tag = 'smem constant byte address 0x4 - core index']
  #allocation1 [shape = 'u32[144,128]{1,0:T(1,128)}', space=vmem, size = 0x12000, scoped, tag = 'internal scratch']
  #allocation2 [shape = 'bf16[144,1024]{1,0:T(8,128)(2,1)}', space=vmem, size = 0x48000, scoped, tag = 'scratch operand']
  %s0 = inlined_call_operand.vmem [shape: bf16[2,16,1152], index: 0, kind: input, shape index: {}, may-alias: {0,1}]
  %s1 = inlined_call_operand.vmem [shape: bf16[2,16,1152], index: 1, kind: input, shape index: {}, may-alias: {0,1}]
  %s2 = inlined_call_operand.vmem [shape: bf16[8,144], index: 2, kind: input, shape index: {}]
  %s3 = inlined_call_operand.vmem [shape: f32[2,8,1024], index: 3, kind: output, shape index: {}]
  %s4 = sld [smem:[#allocation0]]
  $region152: #{upsample_forward.1} parent=0
    _
  %s6 = ssub.s32 1, %s4
  %s7 = scalar_select 0, %s6, %s4
  $region1: #{upsample_forward.1} parent=0
    #allocation3 [shape = 'u8[65536]{0}', space=vmem, size = 0x10000, scoped, tag = 'input window, operand 0']
    #allocation4 [shape = 'u8[8192]{0}', space=vmem, size = 0x2000, scoped, tag = 'input window, operand 1']
    loop: start=0, step=1, limit=4
    $region2: #{upsample_forward.1} parent=1 // loop_pre_header
      _
    $region3: #{upsample_forward.1} parent=1 // loop_header
      %s9 = sphi 0, %s13
      %p10 = scmp.ge.s32.totalorder %s9, 4
      %s16 = sphi 0, %s28
      %s17 = sphi 0, %s24
      %s18 = sphi 0, %s16
      %s19 = sphi 0, %s17
      %s20 = sphi 0, %s18
      %s21 = sphi 0, %s19
      %s33 = sphi 0, %s35
      %s36 = sphi 0, %s33
      %s37 = sphi 0, %s36
      %s53 = sphi 0, %s37
      %s65 = sphi 0, %s67
      %s68 = sphi 0, %s65
      %s69 = sphi 0, %s68
      %s85 = sphi 0, %s69
      %s89 = sphi 0, %s89
      %s91 = sphi 0, %s89
      %s92 = sphi 0, %s91
      %s106 = sphi 0, %s92
      %s114 = sphi 0, %s116
      %s117 = sphi 0, %s114
      %s118 = sphi 0, %s117
      %s134 = sphi 0, %s118
    $region4: #{upsample_forward.1} parent=1 // loop_header_branch
      %12 = sbr.rel (%p10) target = $region8
    $region5: #{upsample_forward.1} parent=1 // loop_body
      %s14 = ssub.s32 %s9, 1
      %s15 = ssub.s32 %s9, 2
      %s22 = sadd.s32 1, %s17
      %p23 = scmp.ge.s32.totalorder %s22, 1
      %s24 = scalar_select %p23, 0, %s22
      %s25 = sadd.s32 1, %s16
      %s26 = scalar_select %p23, %s25, %s16
      %p27 = scmp.ge.s32.totalorder %s26, 2
      %s28 = scalar_select %p27, 0, %s26
      %s29 = ssub.s32 %s16, %s28
      %s30 = ssub.s32 %s17, %s24
      %s31 = sor.u32 %s29, %s30
      %p32 = scmp.eq.s32.totalorder %s31, 0
      %s34 = sadd.s32 %s33, 1
      %s35 = scalar_select %p32, %s33, %s34
      %p38 = pneg %p32
      %p39 = scmp.eq.s32.totalorder %s9, 1
      %p40 = por %p38, %p39
      %p41 = scmp.ne.s32.totalorder %s33, %s36
      %p42 = scmp.eq.s32.totalorder %s9, 0
      %p43 = por %p41, %p42
      %p44 = scmp.ne.s32.totalorder %s33, %s36
      %p45 = scmp.eq.s32.totalorder %s14, 1
      %p46 = por %p44, %p45
      %p47 = scmp.ne.s32.totalorder %s36, %s37
      %p48 = scmp.eq.s32.totalorder %s14, 0
      %p49 = por %p47, %p48
      %p50 = scmp.ne.s32.totalorder %s36, %s37
      %p51 = scmp.eq.s32.totalorder %s15, 1
      %p52 = por %p50, %p51
      %p54 = scmp.ne.s32.totalorder %s37, %s53
      %p55 = scmp.eq.s32.totalorder %s15, 0
      %p56 = por %p54, %p55
      %s57 = sadd.s32 %s17, 1
      %s58 = smul.u32 %s57, 8
      %s59 = sadd.s32 %s24, 1
      %s60 = smul.u32 %s59, 8
      %s61 = ssub.s32 %s16, %s28
      %s62 = ssub.s32 %s58, %s60
      %s63 = sor.u32 %s61, %s62
      %p64 = scmp.eq.s32.totalorder %s63, 0
      %s66 = sadd.s32 %s65, 1
      %s67 = scalar_select %p64, %s65, %s66
      %p70 = pneg %p64
      %p71 = scmp.eq.s32.totalorder %s9, 1
      %p72 = por %p70, %p71
      %p73 = scmp.ne.s32.totalorder %s65, %s68
      %p74 = scmp.eq.s32.totalorder %s9, 0
      %p75 = por %p73, %p74
      %p76 = scmp.ne.s32.totalorder %s65, %s68
      %p77 = scmp.eq.s32.totalorder %s14, 1
      %p78 = por %p76, %p77
      %p79 = scmp.ne.s32.totalorder %s68, %s69
      %p80 = scmp.eq.s32.totalorder %s14, 0
      %p81 = por %p79, %p80
      %p82 = scmp.ne.s32.totalorder %s68, %s69
      %p83 = scmp.eq.s32.totalorder %s15, 1
      %p84 = por %p82, %p83
      %p86 = scmp.ne.s32.totalorder %s69, %s85
      %p87 = scmp.eq.s32.totalorder %s15, 0
      %p88 = por %p86, %p87
      %s90 = sadd.s32 %s89, 1
      %p93 = scmp.eq.s32.totalorder %s9, 1
      %p94 = scmp.ne.s32.totalorder %s89, %s91
      %p95 = scmp.eq.s32.totalorder %s9, 0
      %p96 = por %p94, %p95
      %p97 = scmp.ne.s32.totalorder %s89, %s91
      %p98 = scmp.eq.s32.totalorder %s14, 1
      %p99 = por %p97, %p98
      %p100 = scmp.ne.s32.totalorder %s91, %s92
      %p101 = scmp.eq.s32.totalorder %s14, 0
      %p102 = por %p100, %p101
      %p103 = scmp.ne.s32.totalorder %s91, %s92
      %p104 = scmp.eq.s32.totalorder %s15, 1
      %p105 = por %p103, %p104
      %p107 = scmp.ne.s32.totalorder %s92, %s106
      %p108 = scmp.eq.s32.totalorder %s15, 0
      %p109 = por %p107, %p108
      %s110 = ssub.s32 %s16, %s28
      %s111 = ssub.s32 %s17, %s24
      %s112 = sor.u32 %s110, %s111
      %p113 = scmp.eq.s32.totalorder %s112, 0
      %s115 = sadd.s32 %s114, 1
      %s116 = scalar_select %p113, %s114, %s115
      %p119 = pneg %p113
      %p120 = scmp.eq.s32.totalorder %s9, 1
      %p121 = por %p119, %p120
      %p122 = scmp.ne.s32.totalorder %s114, %s117
      %p123 = scmp.eq.s32.totalorder %s9, 0
      %p124 = por %p122, %p123
      %p125 = scmp.ne.s32.totalorder %s114, %s117
      %p126 = scmp.eq.s32.totalorder %s14, 1
      %p127 = por %p125, %p126
      %p128 = scmp.ne.s32.totalorder %s117, %s118
      %p129 = scmp.eq.s32.totalorder %s14, 0
      %p130 = por %p128, %p129
      %p131 = scmp.ne.s32.totalorder %s117, %s118
      %p132 = scmp.eq.s32.totalorder %s15, 1
      %p133 = por %p131, %p132
      %p135 = scmp.ne.s32.totalorder %s118, %s134
      %p136 = scmp.eq.s32.totalorder %s15, 0
      %p137 = por %p135, %p136
      %p138 = scmp.le.s32.totalorder 1, %s9
      %p139 = scmp.lt.s32.totalorder %s9, 3
      %p140 = pnand %p138, %p139
      %p141 = pneg %p140
      // Predicated region
      $region9: #{upsample_forward.1} parent=5 // pred_check
        _
      $region10: #{upsample_forward.1} parent=5 // pred_check_branch
        %143 = sbr.rel (%p140) target = $region12
      $region11: #{upsample_forward.1} parent=5 // pred_region
        %s144 = ssub.s32 %s9, 1
        // Predicated region
        $region13: #{upsample_forward.1} parent=11 // pred_check
          %p145 = pneg %p102
        $region14: #{upsample_forward.1} parent=11 // pred_check_branch
          %147 = sbr.rel (%p145) target = $region16
        $region15: #{upsample_forward.1} parent=11 // pred_region
          _
        $region16: #{upsample_forward.1} parent=11 // pred_fallthru
          _
      $region12: #{upsample_forward.1} parent=5 // pred_fallthru
        _
      %p148 = scmp.lt.s32.totalorder %s9, 2
      // Predicated region
      $region17: #{upsample_forward.1} parent=5 // pred_check
        %p149 = pneg %p148
      $region18: #{upsample_forward.1} parent=5 // pred_check_branch
        %151 = sbr.rel (%p149) target = $region20
      $region19: #{upsample_forward.1} parent=5 // pred_region
        // Predicated region
        $region21: #{upsample_forward.1} parent=19 // pred_check
          %p152 = pneg %p43
        $region22: #{upsample_forward.1} parent=19 // pred_check_branch
          %154 = sbr.rel (%p152) target = $region24
        $region23: #{upsample_forward.1} parent=19 // pred_region
          %s155 = sand.u32 %s33, 1
          %s156 = sand.u32 %s33, 1
          %s157 = smul.addr %s156, 64
          %s158 = scalar_lea.vmem [#allocation3], %s157
          %s159 = smul.u32 8, %s17
          %s160 = ssub.s32 9, %s159
          %p161 = scmp.lt.s32.totalorder %s160, 8
          %s162 = scalar_select %p161, %s160, 8
          %s163 = smul.u32 128, %s162
          %p164 = scmp.ne.s32.totalorder 0, %s163
          %s165 = smul.addr %s16, 18
          %s166 = sadd.s32 %s159, %s165
          %s167 = smul.addr %s166, 4
          %s168 = scalar_lea.vmem %s0, %s167
          %s169 = smul.u32 %s162, 4
          // Predicated region
          $region25: #{upsample_forward.1} parent=23 // pred_check
            %p170 = pneg %p164
          $region26: #{upsample_forward.1} parent=23 // pred_check_branch
            %172 = sbr.rel (%p170) target = $region28
          $region27: #{upsample_forward.1} parent=23 // pred_region
            %p173 = scmp.lt.u32.totalorder %s169, 8
            %p174 = pneg %p173
            // Predicated region
            $region29: #{upsample_forward.1} parent=27 // pred_check
              _
            $region30: #{upsample_forward.1} parent=27 // pred_check_branch
              %176 = sbr.rel (%p173) target = $region32
            $region31: #{upsample_forward.1} parent=27 // pred_region
              %s194 = sand.u32 %s169, 7
              %p195 = scmp.eq.s32.totalorder %s194, 0
              // Predicated region
              $region44: #{upsample_forward.1} parent=31 // pred_check
                %p196 = pneg %p195
              $region45: #{upsample_forward.1} parent=31 // pred_check_branch
                %198 = sbr.rel (%p196) target = $region47
              $region46: #{upsample_forward.1} parent=31 // pred_region
                %s199 = sshrl.u32 %s169, 3
                %s200 = sshrl.u32 %s199, 5
                // While loop
                $region48: #{upsample_forward.1} parent=46 // loop_pre_header
                  _
                $region49: #{upsample_forward.1} parent=46 // loop_header
                  %s204 = sphi 0, %s206
                  %p205 = scmp.ge.s32.totalorder %s204, %s200
                  %s209 = sphi 0, %s342
                  %s210 = sphi %s168, %s345
                  %s211 = sphi %s158, %s346
                $region50: #{upsample_forward.1} parent=46 // loop_header_branch
                  %208 = sbr.rel (%p205) target = $region54
                $region51: #{upsample_forward.1} parent=46 // loop_body
                  %v212 = vld [vmem:[%s210] sm:$0xff]
                  %213 = vst [vmem:[%s211] sm:$0xff] %v212
                  %v214 = vld [vmem:[%s210 + $0x8] sm:$0xff]
                  %215 = vst [vmem:[%s211 + $0x8] sm:$0xff] %v214
                  %v216 = vld [vmem:[%s210 + $0x10] sm:$0xff]
                  %217 = vst [vmem:[%s211 + $0x10] sm:$0xff] %v216
                  %v218 = vld [vmem:[%s210 + $0x18] sm:$0xff]
                  %219 = vst [vmem:[%s211 + $0x18] sm:$0xff] %v218
                  %v220 = vld [vmem:[%s210 + $0x20] sm:$0xff]
                  %221 = vst [vmem:[%s211 + $0x20] sm:$0xff] %v220
                  %v222 = vld [vmem:[%s210 + $0x28] sm:$0xff]
                  %223 = vst [vmem:[%s211 + $0x28] sm:$0xff] %v222
                  %v224 = vld [vmem:[%s210 + $0x30] sm:$0xff]
                  %225 = vst [vmem:[%s211 + $0x30] sm:$0xff] %v224
                  %v226 = vld [vmem:[%s210 + $0x38] sm:$0xff]
                  %227 = vst [vmem:[%s211 + $0x38] sm:$0xff] %v226
                  %v228 = vld [vmem:[%s210 + $0x40] sm:$0xff]
                  %229 = vst [vmem:[%s211 + $0x40] sm:$0xff] %v228
                  %v230 = vld [vmem:[%s210 + $0x48] sm:$0xff]
                  %231 = vst [vmem:[%s211 + $0x48] sm:$0xff] %v230
                  %v232 = vld [vmem:[%s210 + $0x50] sm:$0xff]
                  %233 = vst [vmem:[%s211 + $0x50] sm:$0xff] %v232
                  %v234 = vld [vmem:[%s210 + $0x58] sm:$0xff]
                  %235 = vst [vmem:[%s211 + $0x58] sm:$0xff] %v234
                  %v236 = vld [vmem:[%s210 + $0x60] sm:$0xff]
                  %237 = vst [vmem:[%s211 + $0x60] sm:$0xff] %v236
                  %v238 = vld [vmem:[%s210 + $0x68] sm:$0xff]
                  %239 = vst [vmem:[%s211 + $0x68] sm:$0xff] %v238
                  %v240 = vld [vmem:[%s210 + $0x70] sm:$0xff]
                  %241 = vst [vmem:[%s211 + $0x70] sm:$0xff] %v240
                  %v242 = vld [vmem:[%s210 + $0x78] sm:$0xff]
                  %243 = vst [vmem:[%s211 + $0x78] sm:$0xff] %v242
                  %v244 = vld [vmem:[%s210 + $0x80] sm:$0xff]
                  %245 = vst [vmem:[%s211 + $0x80] sm:$0xff] %v244
                  %v246 = vld [vmem:[%s210 + $0x88] sm:$0xff]
                  %247 = vst [vmem:[%s211 + $0x88] sm:$0xff] %v246
                  %v248 = vld [vmem:[%s210 + $0x90] sm:$0xff]
                  %249 = vst [vmem:[%s211 + $0x90] sm:$0xff] %v248
                  %v250 = vld [vmem:[%s210 + $0x98] sm:$0xff]
                  %251 = vst [vmem:[%s211 + $0x98] sm:$0xff] %v250
                  %v252 = vld [vmem:[%s210 + $0xa0] sm:$0xff]
                  %253 = vst [vmem:[%s211 + $0xa0] sm:$0xff] %v252
                  %v254 = vld [vmem:[%s210 + $0xa8] sm:$0xff]
                  %255 = vst [vmem:[%s211 + $0xa8] sm:$0xff] %v254
                  %v256 = vld [vmem:[%s210 + $0xb0] sm:$0xff]
                  %257 = vst [vmem:[%s211 + $0xb0] sm:$0xff] %v256
                  %v258 = vld [vmem:[%s210 + $0xb8] sm:$0xff]
                  %259 = vst [vmem:[%s211 + $0xb8] sm:$0xff] %v258
                  %v260 = vld [vmem:[%s210 + $0xc0] sm:$0xff]
                  %261 = vst [vmem:[%s211 + $0xc0] sm:$0xff] %v260
                  %v262 = vld [vmem:[%s210 + $0xc8] sm:$0xff]
                  %263 = vst [vmem:[%s211 + $0xc8] sm:$0xff] %v262
                  %v264 = vld [vmem:[%s210 + $0xd0] sm:$0xff]
                  %265 = vst [vmem:[%s211 + $0xd0] sm:$0xff] %v264
                  %v266 = vld [vmem:[%s210 + $0xd8] sm:$0xff]
                  %267 = vst [vmem:[%s211 + $0xd8] sm:$0xff] %v266
                  %v268 = vld [vmem:[%s210 + $0xe0] sm:$0xff]
                  %269 = vst [vmem:[%s211 + $0xe0] sm:$0xff] %v268
                  %v270 = vld [vmem:[%s210 + $0xe8] sm:$0xff]
                  %271 = vst [vmem:[%s211 + $0xe8] sm:$0xff] %v270
                  %v272 = vld [vmem:[%s210 + $0xf0] sm:$0xff]
                  %273 = vst [vmem:[%s211 + $0xf0] sm:$0xff] %v272
                  %v274 = vld [vmem:[%s210 + $0xf8] sm:$0xff]
                  %275 = vst [vmem:[%s211 + $0xf8] sm:$0xff] %v274
                  %v276 = vld [vmem:[%s210 + $0x24] sm:$0xff]
                  %277 = vst [vmem:[%s211 + $0x20] sm:$0xff] %v276
                  %v278 = vld [vmem:[%s210 + $0x2c] sm:$0xff]
                  %279 = vst [vmem:[%s211 + $0x28] sm:$0xff] %v278
                  %v280 = vld [vmem:[%s210 + $0x34] sm:$0xff]
                  %281 = vst [vmem:[%s211 + $0x30] sm:$0xff] %v280
                  %v282 = vld [vmem:[%s210 + $0x3c] sm:$0xff]
                  %283 = vst [vmem:[%s211 + $0x38] sm:$0xff] %v282
                  %v284 = vld [vmem:[%s210 + $0x44] sm:$0xff]
                  %285 = vst [vmem:[%s211 + $0x40] sm:$0xff] %v284
                  %v286 = vld [vmem:[%s210 + $0x4c] sm:$0xff]
                  %287 = vst [vmem:[%s211 + $0x48] sm:$0xff] %v286
                  %v288 = vld [vmem:[%s210 + $0x54] sm:$0xff]
                  %289 = vst [vmem:[%s211 + $0x50] sm:$0xff] %v288
                  %v290 = vld [vmem:[%s210 + $0x5c] sm:$0xff]
                  %291 = vst [vmem:[%s211 + $0x58] sm:$0xff] %v290
                  %v292 = vld [vmem:[%s210 + $0x64] sm:$0xff]
                  %293 = vst [vmem:[%s211 + $0x60] sm:$0xff] %v292
                  %v294 = vld [vmem:[%s210 + $0x6c] sm:$0xff]
                  %295 = vst [vmem:[%s211 + $0x68] sm:$0xff] %v294
                  %v296 = vld [vmem:[%s210 + $0x74] sm:$0xff]
                  %297 = vst [vmem:[%s211 + $0x70] sm:$0xff] %v296
                  %v298 = vld [vmem:[%s210 + $0x7c] sm:$0xff]
                  %299 = vst [vmem:[%s211 + $0x78] sm:$0xff] %v298
                  %v300 = vld [vmem:[%s210 + $0x84] sm:$0xff]
                  %301 = vst [vmem:[%s211 + $0x80] sm:$0xff] %v300
                  %v302 = vld [vmem:[%s210 + $0x8c] sm:$0xff]
                  %303 = vst [vmem:[%s211 + $0x88] sm:$0xff] %v302
                  %v304 = vld [vmem:[%s210 + $0x94] sm:$0xff]
                  %305 = vst [vmem:[%s211 + $0x90] sm:$0xff] %v304
                  %v306 = vld [vmem:[%s210 + $0x9c] sm:$0xff]
                  %307 = vst [vmem:[%s211 + $0x98] sm:$0xff] %v306
                  %v308 = vld [vmem:[%s210 + $0xa4] sm:$0xff]
                  %309 = vst [vmem:[%s211 + $0xa0] sm:$0xff] %v308
                  %v310 = vld [vmem:[%s210 + $0xac] sm:$0xff]
                  %311 = vst [vmem:[%s211 + $0xa8] sm:$0xff] %v310
                  %v312 = vld [vmem:[%s210 + $0xb4] sm:$0xff]
                  %313 = vst [vmem:[%s211 + $0xb0] sm:$0xff] %v312
                  %v314 = vld [vmem:[%s210 + $0xbc] sm:$0xff]
                  %315 = vst [vmem:[%s211 + $0xb8] sm:$0xff] %v314
                  %v316 = vld [vmem:[%s210 + $0xc4] sm:$0xff]
                  %317 = vst [vmem:[%s211 + $0xc0] sm:$0xff] %v316
                  %v318 = vld [vmem:[%s210 + $0xcc] sm:$0xff]
                  %319 = vst [vmem:[%s211 + $0xc8] sm:$0xff] %v318
                  %v320 = vld [vmem:[%s210 + $0xd4] sm:$0xff]
                  %321 = vst [vmem:[%s211 + $0xd0] sm:$0xff] %v320
                  %v322 = vld [vmem:[%s210 + $0xdc] sm:$0xff]
                  %323 = vst [vmem:[%s211 + $0xd8] sm:$0xff] %v322
                  %v324 = vld [vmem:[%s210 + $0xe4] sm:$0xff]
                  %325 = vst [vmem:[%s211 + $0xe0] sm:$0xff] %v324
                  %v326 = vld [vmem:[%s210 + $0xec] sm:$0xff]
                  %327 = vst [vmem:[%s211 + $0xe8] sm:$0xff] %v326
                  %v328 = vld [vmem:[%s210 + $0xf4] sm:$0xff]
                  %329 = vst [vmem:[%s211 + $0xf0] sm:$0xff] %v328
                  %v330 = vld [vmem:[%s210 + $0xfc] sm:$0xff]
                  %331 = vst [vmem:[%s211 + $0xf8] sm:$0xff] %v330
                  %v332 = vld [vmem:[%s210 + $0x104] sm:$0xff]
                  %333 = vst [vmem:[%s211 + $0x100] sm:$0xff] %v332
                  %v334 = vld [vmem:[%s210 + $0x10c] sm:$0xff]
                  %335 = vst [vmem:[%s211 + $0x108] sm:$0xff] %v334
                  %v336 = vld [vmem:[%s210 + $0x114] sm:$0xff]
                  %337 = vst [vmem:[%s211 + $0x110] sm:$0xff] %v336
                  %v338 = vld [vmem:[%s210 + $0x11c] sm:$0xff]
                  %339 = vst [vmem:[%s211 + $0x118] sm:$0xff] %v338
                  %s340 = sadd.s32 1, %s209
                  %p341 = scmp.ge.s32.totalorder %s340, %s200
                  %s342 = scalar_select %p341, 0, %s340
                  %s343 = smul.u32 %s342, 256
                  %s344 = smul.u32 %s342, 256
                  %s345 = scalar_lea.vmem %s168, %s343
                  %s346 = scalar_lea.vmem %s158, %s344 [#allocation3]
                $region52: #{upsample_forward.1} parent=46 // loop_footer
                  %s206 = sadd.s32 %s204, 1
                $region53: #{upsample_forward.1} parent=46 // loop_footer_branch
                  %203 = sbr.rel target = $region49
                $region54: #{upsample_forward.1} parent=46 // loop_exit
                  _
                %s347 = sshrl.u32 %s199, 5
                %s348 = sand.u32 %s199, 31
                %s349 = smul.u32 %s347, 32
                %s350 = smul.u32 128, %s349
                %s351 = sshra.s32 %s350, 4
                %s352 = scalar_lea.vmem %s168, %s351
                %s353 = smul.u32 128, %s349
                %s354 = sshra.s32 %s353, 4
                %s355 = scalar_lea.vmem %s158, %s354 [#allocation3]
                // While loop
                $region55: #{upsample_forward.1} parent=46 // loop_pre_header
                  _
                $region56: #{upsample_forward.1} parent=46 // loop_header
                  %s359 = sphi 0, %s361
                  %p360 = scmp.ge.s32.totalorder %s359, %s348
                  %s364 = sphi 0, %s373
                  %s365 = sphi %s352, %s376
                  %s366 = sphi %s355, %s377
                $region57: #{upsample_forward.1} parent=46 // loop_header_branch
                  %363 = sbr.rel (%p360) target = $region61
                $region58: #{upsample_forward.1} parent=46 // loop_body
                  %v367 = vld [vmem:[%s365] sm:$0xff]
                  %368 = vst [vmem:[%s366] sm:$0xff] %v367
                  %v369 = vld [vmem:[%s365 + $0x24] sm:$0xff]
                  %370 = vst [vmem:[%s366 + $0x20] sm:$0xff] %v369
                  %s371 = sadd.s32 1, %s364
                  %p372 = scmp.ge.s32.totalorder %s371, %s348
                  %s373 = scalar_select %p372, 0, %s371
                  %s374 = smul.u32 %s373, 8
                  %s375 = smul.u32 %s373, 8
                  %s376 = scalar_lea.vmem %s352, %s374
                  %s377 = scalar_lea.vmem %s355, %s375 [#allocation3]
                $region59: #{upsample_forward.1} parent=46 // loop_footer
                  %s361 = sadd.s32 %s359, 1
                $region60: #{upsample_forward.1} parent=46 // loop_footer_branch
                  %358 = sbr.rel target = $region56
                $region61: #{upsample_forward.1} parent=46 // loop_exit
                  _
              $region47: #{upsample_forward.1} parent=31 // pred_fallthru
                _
              %p378 = pneg %p195
              // Predicated region
              $region62: #{upsample_forward.1} parent=31 // pred_check
                _
              $region63: #{upsample_forward.1} parent=31 // pred_check_branch
                %380 = sbr.rel (%p195) target = $region65
              $region64: #{upsample_forward.1} parent=31 // pred_region
                %s381 = sand.u32 %s169, 7
                %s382 = ssub.s32 %s169, %s381
                %s383 = scalar_lea.vmem %s168, %s382
                %s384 = ssub.s32 %s169, %s381
                %s385 = scalar_lea.vmem %s158, %s384 [#allocation3]
                %s386 = sshrl.u32 %s169, 3
                %s387 = sshrl.u32 %s386, 5
                // While loop
                $region66: #{upsample_forward.1} parent=64 // loop_pre_header
                  _
                $region67: #{upsample_forward.1} parent=64 // loop_header
                  %s391 = sphi 0, %s393
                  %p392 = scmp.ge.s32.totalorder %s391, %s387
                  %s396 = sphi 0, %s529
                  %s397 = sphi %s168, %s532
                  %s398 = sphi %s158, %s533
                $region68: #{upsample_forward.1} parent=64 // loop_header_branch
                  %395 = sbr.rel (%p392) target = $region72
                $region69: #{upsample_forward.1} parent=64 // loop_body
                  %v399 = vld [vmem:[%s397] sm:$0xff]
                  %400 = vst [vmem:[%s398] sm:$0xff] %v399
                  %v401 = vld [vmem:[%s397 + $0x8] sm:$0xff]
                  %402 = vst [vmem:[%s398 + $0x8] sm:$0xff] %v401
                  %v403 = vld [vmem:[%s397 + $0x10] sm:$0xff]
                  %404 = vst [vmem:[%s398 + $0x10] sm:$0xff] %v403
                  %v405 = vld [vmem:[%s397 + $0x18] sm:$0xff]
                  %406 = vst [vmem:[%s398 + $0x18] sm:$0xff] %v405
                  %v407 = vld [vmem:[%s397 + $0x20] sm:$0xff]
                  %408 = vst [vmem:[%s398 + $0x20] sm:$0xff] %v407
                  %v409 = vld [vmem:[%s397 + $0x28] sm:$0xff]
                  %410 = vst [vmem:[%s398 + $0x28] sm:$0xff] %v409
                  %v411 = vld [vmem:[%s397 + $0x30] sm:$0xff]
                  %412 = vst [vmem:[%s398 + $0x30] sm:$0xff] %v411
                  %v413 = vld [vmem:[%s397 + $0x38] sm:$0xff]
                  %414 = vst [vmem:[%s398 + $0x38] sm:$0xff] %v413
                  %v415 = vld [vmem:[%s397 + $0x40] sm:$0xff]
                  %416 = vst [vmem:[%s398 + $0x40] sm:$0xff] %v415
                  %v417 = vld [vmem:[%s397 + $0x48] sm:$0xff]
                  %418 = vst [vmem:[%s398 + $0x48] sm:$0xff] %v417
                  %v419 = vld [vmem:[%s397 + $0x50] sm:$0xff]
                  %420 = vst [vmem:[%s398 + $0x50] sm:$0xff] %v419
                  %v421 = vld [vmem:[%s397 + $0x58] sm:$0xff]
                  %422 = vst [vmem:[%s398 + $0x58] sm:$0xff] %v421
                  %v423 = vld [vmem:[%s397 + $0x60] sm:$0xff]
                  %424 = vst [vmem:[%s398 + $0x60] sm:$0xff] %v423
                  %v425 = vld [vmem:[%s397 + $0x68] sm:$0xff]
                  %426 = vst [vmem:[%s398 + $0x68] sm:$0xff] %v425
                  %v427 = vld [vmem:[%s397 + $0x70] sm:$0xff]
                  %428 = vst [vmem:[%s398 + $0x70] sm:$0xff] %v427
                  %v429 = vld [vmem:[%s397 + $0x78] sm:$0xff]
                  %430 = vst [vmem:[%s398 + $0x78] sm:$0xff] %v429
                  %v431 = vld [vmem:[%s397 + $0x80] sm:$0xff]
                  %432 = vst [vmem:[%s398 + $0x80] sm:$0xff] %v431
                  %v433 = vld [vmem:[%s397 + $0x88] sm:$0xff]
                  %434 = vst [vmem:[%s398 + $0x88] sm:$0xff] %v433
                  %v435 = vld [vmem:[%s397 + $0x90] sm:$0xff]
                  %436 = vst [vmem:[%s398 + $0x90] sm:$0xff] %v435
                  %v437 = vld [vmem:[%s397 + $0x98] sm:$0xff]
                  %438 = vst [vmem:[%s398 + $0x98] sm:$0xff] %v437
                  %v439 = vld [vmem:[%s397 + $0xa0] sm:$0xff]
                  %440 = vst [vmem:[%s398 + $0xa0] sm:$0xff] %v439
                  %v441 = vld [vmem:[%s397 + $0xa8] sm:$0xff]
                  %442 = vst [vmem:[%s398 + $0xa8] sm:$0xff] %v441
                  %v443 = vld [vmem:[%s397 + $0xb0] sm:$0xff]
                  %444 = vst [vmem:[%s398 + $0xb0] sm:$0xff] %v443
                  %v445 = vld [vmem:[%s397 + $0xb8] sm:$0xff]
                  %446 = vst [vmem:[%s398 + $0xb8] sm:$0xff] %v445
                  %v447 = vld [vmem:[%s397 + $0xc0] sm:$0xff]
                  %448 = vst [vmem:[%s398 + $0xc0] sm:$0xff] %v447
                  %v449 = vld [vmem:[%s397 + $0xc8] sm:$0xff]
                  %450 = vst [vmem:[%s398 + $0xc8] sm:$0xff] %v449
                  %v451 = vld [vmem:[%s397 + $0xd0] sm:$0xff]
                  %452 = vst [vmem:[%s398 + $0xd0] sm:$0xff] %v451
                  %v453 = vld [vmem:[%s397 + $0xd8] sm:$0xff]
                  %454 = vst [vmem:[%s398 + $0xd8] sm:$0xff] %v453
                  %v455 = vld [vmem:[%s397 + $0xe0] sm:$0xff]
                  %456 = vst [vmem:[%s398 + $0xe0] sm:$0xff] %v455
                  %v457 = vld [vmem:[%s397 + $0xe8] sm:$0xff]
                  %458 = vst [vmem:[%s398 + $0xe8] sm:$0xff] %v457
                  %v459 = vld [vmem:[%s397 + $0xf0] sm:$0xff]
                  %460 = vst [vmem:[%s398 + $0xf0] sm:$0xff] %v459
                  %v461 = vld [vmem:[%s397 + $0xf8] sm:$0xff]
                  %462 = vst [vmem:[%s398 + $0xf8] sm:$0xff] %v461
                  %v463 = vld [vmem:[%s397 + $0x24] sm:$0xff]
                  %464 = vst [vmem:[%s398 + $0x20] sm:$0xff] %v463
                  %v465 = vld [vmem:[%s397 + $0x2c] sm:$0xff]
                  %466 = vst [vmem:[%s398 + $0x28] sm:$0xff] %v465
                  %v467 = vld [vmem:[%s397 + $0x34] sm:$0xff]
                  %468 = vst [vmem:[%s398 + $0x30] sm:$0xff] %v467
                  %v469 = vld [vmem:[%s397 + $0x3c] sm:$0xff]
                  %470 = vst [vmem:[%s398 + $0x38] sm:$0xff] %v469
                  %v471 = vld [vmem:[%s397 + $0x44] sm:$0xff]
                  %472 = vst [vmem:[%s398 + $0x40] sm:$0xff] %v471
                  %v473 = vld [vmem:[%s397 + $0x4c] sm:$0xff]
                  %474 = vst [vmem:[%s398 + $0x48] sm:$0xff] %v473
                  %v475 = vld [vmem:[%s397 + $0x54] sm:$0xff]
                  %476 = vst [vmem:[%s398 + $0x50] sm:$0xff] %v475
                  %v477 = vld [vmem:[%s397 + $0x5c] sm:$0xff]
                  %478 = vst [vmem:[%s398 + $0x58] sm:$0xff] %v477
                  %v479 = vld [vmem:[%s397 + $0x64] sm:$0xff]
                  %480 = vst [vmem:[%s398 + $0x60] sm:$0xff] %v479
                  %v481 = vld [vmem:[%s397 + $0x6c] sm:$0xff]
                  %482 = vst [vmem:[%s398 + $0x68] sm:$0xff] %v481
                  %v483 = vld [vmem:[%s397 + $0x74] sm:$0xff]
                  %484 = vst [vmem:[%s398 + $0x70] sm:$0xff] %v483
                  %v485 = vld [vmem:[%s397 + $0x7c] sm:$0xff]
                  %486 = vst [vmem:[%s398 + $0x78] sm:$0xff] %v485
                  %v487 = vld [vmem:[%s397 + $0x84] sm:$0xff]
                  %488 = vst [vmem:[%s398 + $0x80] sm:$0xff] %v487
                  %v489 = vld [vmem:[%s397 + $0x8c] sm:$0xff]
                  %490 = vst [vmem:[%s398 + $0x88] sm:$0xff] %v489
                  %v491 = vld [vmem:[%s397 + $0x94] sm:$0xff]
                  %492 = vst [vmem:[%s398 + $0x90] sm:$0xff] %v491
                  %v493 = vld [vmem:[%s397 + $0x9c] sm:$0xff]
                  %494 = vst [vmem:[%s398 + $0x98] sm:$0xff] %v493
                  %v495 = vld [vmem:[%s397 + $0xa4] sm:$0xff]
                  %496 = vst [vmem:[%s398 + $0xa0] sm:$0xff] %v495
                  %v497 = vld [vmem:[%s397 + $0xac] sm:$0xff]
                  %498 = vst [vmem:[%s398 + $0xa8] sm:$0xff] %v497
                  %v499 = vld [vmem:[%s397 + $0xb4] sm:$0xff]
                  %500 = vst [vmem:[%s398 + $0xb0] sm:$0xff] %v499
                  %v501 = vld [vmem:[%s397 + $0xbc] sm:$0xff]
                  %502 = vst [vmem:[%s398 + $0xb8] sm:$0xff] %v501
                  %v503 = vld [vmem:[%s397 + $0xc4] sm:$0xff]
                  %504 = vst [vmem:[%s398 + $0xc0] sm:$0xff] %v503
                  %v505 = vld [vmem:[%s397 + $0xcc] sm:$0xff]
                  %506 = vst [vmem:[%s398 + $0xc8] sm:$0xff] %v505
                  %v507 = vld [vmem:[%s397 + $0xd4] sm:$0xff]
                  %508 = vst [vmem:[%s398 + $0xd0] sm:$0xff] %v507
                  %v509 = vld [vmem:[%s397 + $0xdc] sm:$0xff]
                  %510 = vst [vmem:[%s398 + $0xd8] sm:$0xff] %v509
                  %v511 = vld [vmem:[%s397 + $0xe4] sm:$0xff]
                  %512 = vst [vmem:[%s398 + $0xe0] sm:$0xff] %v511
                  %v513 = vld [vmem:[%s397 + $0xec] sm:$0xff]
                  %514 = vst [vmem:[%s398 + $0xe8] sm:$0xff] %v513
                  %v515 = vld [vmem:[%s397 + $0xf4] sm:$0xff]
                  %516 = vst [vmem:[%s398 + $0xf0] sm:$0xff] %v515
                  %v517 = vld [vmem:[%s397 + $0xfc] sm:$0xff]
                  %518 = vst [vmem:[%s398 + $0xf8] sm:$0xff] %v517
                  %v519 = vld [vmem:[%s397 + $0x104] sm:$0xff]
                  %520 = vst [vmem:[%s398 + $0x100] sm:$0xff] %v519
                  %v521 = vld [vmem:[%s397 + $0x10c] sm:$0xff]
                  %522 = vst [vmem:[%s398 + $0x108] sm:$0xff] %v521
                  %v523 = vld [vmem:[%s397 + $0x114] sm:$0xff]
                  %524 = vst [vmem:[%s398 + $0x110] sm:$0xff] %v523
                  %v525 = vld [vmem:[%s397 + $0x11c] sm:$0xff]
                  %526 = vst [vmem:[%s398 + $0x118] sm:$0xff] %v525
                  %s527 = sadd.s32 1, %s396
                  %p528 = scmp.ge.s32.totalorder %s527, %s387
                  %s529 = scalar_select %p528, 0, %s527
                  %s530 = smul.u32 %s529, 256
                  %s531 = smul.u32 %s529, 256
                  %s532 = scalar_lea.vmem %s168, %s530
                  %s533 = scalar_lea.vmem %s158, %s531 [#allocation3]
                $region70: #{upsample_forward.1} parent=64 // loop_footer
                  %s393 = sadd.s32 %s391, 1
                $region71: #{upsample_forward.1} parent=64 // loop_footer_branch
                  %390 = sbr.rel target = $region67
                $region72: #{upsample_forward.1} parent=64 // loop_exit
                  _
                %s534 = sshrl.u32 %s386, 5
                %s535 = sand.u32 %s386, 31
                %s536 = smul.u32 %s534, 32
                %s537 = smul.u32 128, %s536
                %s538 = sshra.s32 %s537, 4
                %s539 = scalar_lea.vmem %s168, %s538
                %s540 = smul.u32 128, %s536
                %s541 = sshra.s32 %s540, 4
                %s542 = scalar_lea.vmem %s158, %s541 [#allocation3]
                // While loop
                $region73: #{upsample_forward.1} parent=64 // loop_pre_header
                  _
                $region74: #{upsample_forward.1} parent=64 // loop_header
                  %s546 = sphi 0, %s548
                  %p547 = scmp.ge.s32.totalorder %s546, %s535
                  %s551 = sphi 0, %s560
                  %s552 = sphi %s539, %s563
                  %s553 = sphi %s542, %s564
                $region75: #{upsample_forward.1} parent=64 // loop_header_branch
                  %550 = sbr.rel (%p547) target = $region79
                $region76: #{upsample_forward.1} parent=64 // loop_body
                  %v554 = vld [vmem:[%s552] sm:$0xff]
                  %555 = vst [vmem:[%s553] sm:$0xff] %v554
                  %v556 = vld [vmem:[%s552 + $0x24] sm:$0xff]
                  %557 = vst [vmem:[%s553 + $0x20] sm:$0xff] %v556
                  %s558 = sadd.s32 1, %s551
                  %p559 = scmp.ge.s32.totalorder %s558, %s535
                  %s560 = scalar_select %p559, 0, %s558
                  %s561 = smul.u32 %s560, 8
                  %s562 = smul.u32 %s560, 8
                  %s563 = scalar_lea.vmem %s539, %s561
                  %s564 = scalar_lea.vmem %s542, %s562 [#allocation3]
                $region77: #{upsample_forward.1} parent=64 // loop_footer
                  %s548 = sadd.s32 %s546, 1
                $region78: #{upsample_forward.1} parent=64 // loop_footer_branch
                  %545 = sbr.rel target = $region74
                $region79: #{upsample_forward.1} parent=64 // loop_exit
                  _
                %s565 = sshll.u32 1, %s381
                %s566 = ssub.s32 %s565, 1
                loop: start=0, step=1, limit=1
                $region80: #{upsample_forward.1} parent=64 // loop_pre_header
                  _
                $region81: #{upsample_forward.1} parent=64 // loop_header
                  %s568 = sphi 0, %s572
                  %p569 = scmp.ge.s32.totalorder %s568, 1
                  %s573 = sphi %s383, %s383
                  %s574 = sphi %s385, %s385
                $region82: #{upsample_forward.1} parent=64 // loop_header_branch
                  %571 = sbr.rel (%p569) target = $region86
                $region83: #{upsample_forward.1} parent=64 // loop_body
                  %v575 = vld [vmem:[%s573] sm:%s566]
                  %576 = vst [vmem:[%s574] sm:%s566] %v575
                  %v577 = vld [vmem:[%s573 + $0x24] sm:%s566]
                  %578 = vst [vmem:[%s574 + $0x20] sm:%s566] %v577
                $region84: #{upsample_forward.1} parent=64 // loop_footer
                  %s572 = sadd.s32 1, %s568
                $region85: #{upsample_forward.1} parent=64 // loop_footer_branch
                  %567 = sbr.rel target = $region81
                $region86: #{upsample_forward.1} parent=64 // loop_exit
                  _
              $region65: #{upsample_forward.1} parent=31 // pred_fallthru
                _
            $region32: #{upsample_forward.1} parent=27 // pred_fallthru
              _
            // Predicated region
            $region33: #{upsample_forward.1} parent=27 // pred_check
              %p177 = pneg %p173
            $region34: #{upsample_forward.1} parent=27 // pred_check_branch
              %179 = sbr.rel (%p177) target = $region36
            $region35: #{upsample_forward.1} parent=27 // pred_region
              %s180 = sshll.u32 1, %s169
              %s181 = ssub.s32 %s180, 1
              loop: start=0, step=1, limit=1
              $region37: #{upsample_forward.1} parent=35 // loop_pre_header
                _
              $region38: #{upsample_forward.1} parent=35 // loop_header
                %s183 = sphi 0, %s187
                %p184 = scmp.ge.s32.totalorder %s183, 1
                %s188 = sphi %s168, %s168
                %s189 = sphi %s158, %s158
              $region39: #{upsample_forward.1} parent=35 // loop_header_branch
                %186 = sbr.rel (%p184) target = $region43
              $region40: #{upsample_forward.1} parent=35 // loop_body
                %v190 = vld [vmem:[%s188] sm:%s181]
                %191 = vst [vmem:[%s189] sm:%s181] %v190
                %v192 = vld [vmem:[%s188 + $0x24] sm:%s181]
                %193 = vst [vmem:[%s189 + $0x20] sm:%s181] %v192
              $region41: #{upsample_forward.1} parent=35 // loop_footer
                %s187 = sadd.s32 1, %s183
              $region42: #{upsample_forward.1} parent=35 // loop_footer_branch
                %182 = sbr.rel target = $region38
              $region43: #{upsample_forward.1} parent=35 // loop_exit
                _
            $region36: #{upsample_forward.1} parent=27 // pred_fallthru
              _
          $region28: #{upsample_forward.1} parent=23 // pred_fallthru
            _
          %579 = vnop
        $region24: #{upsample_forward.1} parent=19 // pred_fallthru
          _
        // Predicated region
        $region87: #{upsample_forward.1} parent=19 // pred_check
          %p580 = pneg %p75
        $region88: #{upsample_forward.1} parent=19 // pred_check_branch
          %582 = sbr.rel (%p580) target = $region90
        $region89: #{upsample_forward.1} parent=19 // pred_region
          %s583 = sand.u32 %s65, 1
          %s584 = sand.u32 %s65, 1
          %s585 = smul.addr %s584, 8
          %s586 = scalar_lea.vmem [#allocation4], %s585
          %s587 = sadd.s32 %s17, 1
          %s588 = smul.u32 %s587, 8
          %s589 = smul.addr %s16, 18
          %s590 = sadd.s32 %s588, %s589
          %s591 = smul.addr %s590, 4
          %s592 = scalar_lea.vmem %s1, %s591
          // Predicated region
          $region91: #{upsample_forward.1} parent=89 // pred_check
            _
          $region92: #{upsample_forward.1} parent=89 // pred_check_branch
            %594 = sbr.rel (0) target = $region94
          $region93: #{upsample_forward.1} parent=89 // pred_region
            // Predicated region
            $region95: #{upsample_forward.1} parent=93 // pred_check
              _
            $region96: #{upsample_forward.1} parent=93 // pred_check_branch
              %596 = sbr.rel target = $region98
            $region97: #{upsample_forward.1} parent=93 // pred_region
              // Predicated region
              $region110: #{upsample_forward.1} parent=97 // pred_check
                _
              $region111: #{upsample_forward.1} parent=97 // pred_check_branch
                %614 = sbr.rel (0) target = $region113
              $region112: #{upsample_forward.1} parent=97 // pred_region
                loop: start=0, step=1, limit=1
                $region114: #{upsample_forward.1} parent=112 // loop_pre_header
                  _
                $region115: #{upsample_forward.1} parent=112 // loop_header
                  %s616 = sphi 0, %s620
                  %p617 = scmp.ge.s32.totalorder %s616, 1
                  %s621 = sphi %s592, %s592
                  %s622 = sphi %s586, %s586
                $region116: #{upsample_forward.1} parent=112 // loop_header_branch
                  %619 = sbr.rel (%p617) target = $region120
                $region117: #{upsample_forward.1} parent=112 // loop_body
                  _
                $region118: #{upsample_forward.1} parent=112 // loop_footer
                  %s620 = sadd.s32 1, %s616
                $region119: #{upsample_forward.1} parent=112 // loop_footer_branch
                  %615 = sbr.rel target = $region115
                $region120: #{upsample_forward.1} parent=112 // loop_exit
                  _
                %s624 = ssub.s32 16, 1
                loop: start=0, step=1, limit=1
                $region121: #{upsample_forward.1} parent=112 // loop_pre_header
                  _
                $region122: #{upsample_forward.1} parent=112 // loop_header
                  %s626 = sphi 0, %s630
                  %p627 = scmp.ge.s32.totalorder %s626, 1
                  %s631 = sphi %s592, %s592
                  %s632 = sphi %s586, %s586
                $region123: #{upsample_forward.1} parent=112 // loop_header_branch
                  %629 = sbr.rel (%p627) target = $region127
                $region124: #{upsample_forward.1} parent=112 // loop_body
                  %v633 = vld [vmem:[%s631] sm:%s624]
                  %634 = vst [vmem:[%s632] sm:%s624] %v633
                  %v635 = vld [vmem:[%s631 + $0x24] sm:%s624]
                  %636 = vst [vmem:[%s632 + $0x4] sm:%s624] %v635
                $region125: #{upsample_forward.1} parent=112 // loop_footer
                  %s630 = sadd.s32 1, %s626
                $region126: #{upsample_forward.1} parent=112 // loop_footer_branch
                  %625 = sbr.rel target = $region122
                $region127: #{upsample_forward.1} parent=112 // loop_exit
                  _
              $region113: #{upsample_forward.1} parent=97 // pred_fallthru
                _
            $region98: #{upsample_forward.1} parent=93 // pred_fallthru
              _
            // Predicated region
            $region99: #{upsample_forward.1} parent=93 // pred_check
              _
            $region100: #{upsample_forward.1} parent=93 // pred_check_branch
              %598 = sbr.rel (0) target = $region102
            $region101: #{upsample_forward.1} parent=93 // pred_region
              %s600 = ssub.s32 16, 1
              loop: start=0, step=1, limit=1
              $region103: #{upsample_forward.1} parent=101 // loop_pre_header
                _
              $region104: #{upsample_forward.1} parent=101 // loop_header
                %s602 = sphi 0, %s606
                %p603 = scmp.ge.s32.totalorder %s602, 1
                %s607 = sphi %s592, %s592
                %s608 = sphi %s586, %s586
              $region105: #{upsample_forward.1} parent=101 // loop_header_branch
                %605 = sbr.rel (%p603) target = $region109
              $region106: #{upsample_forward.1} parent=101 // loop_body
                %v609 = vld [vmem:[%s607] sm:%s600]
                %610 = vst [vmem:[%s608] sm:%s600] %v609
                %v611 = vld [vmem:[%s607 + $0x24] sm:%s600]
                %612 = vst [vmem:[%s608 + $0x4] sm:%s600] %v611
              $region107: #{upsample_forward.1} parent=101 // loop_footer
                %s606 = sadd.s32 1, %s602
              $region108: #{upsample_forward.1} parent=101 // loop_footer_branch
                %601 = sbr.rel target = $region104
              $region109: #{upsample_forward.1} parent=101 // loop_exit
                _
            $region102: #{upsample_forward.1} parent=93 // pred_fallthru
              _
          $region94: #{upsample_forward.1} parent=89 // pred_fallthru
            _
          %637 = vnop
        $region90: #{upsample_forward.1} parent=19 // pred_fallthru
          _
      $region20: #{upsample_forward.1} parent=5 // pred_fallthru
        _
      %p638 = scmp.le.s32.totalorder 1, %s9
      %p639 = scmp.lt.s32.totalorder %s9, 3
      %p640 = pnand %p638, %p639
      %p641 = pneg %p640
      // Predicated region
      $region128: #{upsample_forward.1} parent=5 // pred_check
        _
      $region129: #{upsample_forward.1} parent=5 // pred_check_branch
        %643 = sbr.rel (%p640) target = $region131
      $region130: #{upsample_forward.1} parent=5 // pred_region
        %s644 = ssub.s32 %s9, 1
        %s645 = sand.u32 %s36, 1
        %s646 = sand.u32 %s36, 1
        %s647 = smul.addr %s646, 64
        %s648 = scalar_lea.vmem [#allocation3], %s647
        // Predicated region
        $region132: #{upsample_forward.1} parent=130 // pred_check
          %p649 = pneg %p49
        $region133: #{upsample_forward.1} parent=130 // pred_check_branch
          %651 = sbr.rel (%p649) target = $region135
        $region134: #{upsample_forward.1} parent=130 // pred_region
          _
        $region135: #{upsample_forward.1} parent=130 // pred_fallthru
          _
        %s652 = sand.u32 %s68, 1
        %s653 = sand.u32 %s68, 1
        %s654 = smul.addr %s653, 8
        %s655 = scalar_lea.vmem [#allocation4], %s654
        // Predicated region
        $region136: #{upsample_forward.1} parent=130 // pred_check
          %p656 = pneg %p81
        $region137: #{upsample_forward.1} parent=130 // pred_check_branch
          %658 = sbr.rel (%p656) target = $region139
        $region138: #{upsample_forward.1} parent=130 // pred_region
          _
        $region139: #{upsample_forward.1} parent=130 // pred_fallthru
          _
        %s659 = sand.u32 %s36, 1
        %s660 = sand.u32 %s36, 1
        %s661 = smul.addr %s660, 64
        %s662 = scalar_lea.vmem [#allocation3], %s661
        %p663 = pneg %p49
        %p664 = pneg %p46
        %s665 = sand.u32 %s68, 1
        %s666 = sand.u32 %s68, 1
        %s667 = smul.addr %s666, 8
        %s668 = scalar_lea.vmem [#allocation4], %s667
        %p669 = pneg %p81
        %p670 = pneg %p78
        %p671 = pneg %p102
        %p672 = pneg %p99
        %p673 = pneg %p130
        %p674 = pneg %p127
        %s675 = smul.u32 8, %s19
        %p676 = scmp.lt.s32.totalorder %s18, 1
        %s677 = scalar_select %p676, %s18, 1
        %p678 = scmp.lt.s32.totalorder %s675, 7
        %s679 = scalar_select %p678, %s675, 7
        %s680 = smul.addr %s677, 8
        %s681 = sadd.s32 %s679, %s680
        %s682 = smul.addr %s681, 8
        %s683 = scalar_lea.vmem %s3, %s682
        %s684 = smul.u32 8, %s19
        %s685 = ssub.s32 9, %s684
        %p686 = scmp.lt.s32.totalorder %s685, 8
        %s687 = scalar_select %p686, %s685, 8
        %s688 = smul.u32 128, %s687
        %s689 = sadd.s32 %s19, 1
        %s690 = smul.u32 %s689, 8
        %s691 = smul.u32 8, %s19
        %p692 = scmp.lt.s32.totalorder %s18, 1
        %s693 = scalar_select %p692, %s18, 1
        %p694 = scmp.lt.s32.totalorder %s691, 7
        %s695 = scalar_select %p694, %s691, 7
        %s696 = smul.addr %s693, 8
        %s697 = sadd.s32 %s695, %s696
        %s698 = smul.addr %s697, 8
        %s699 = scalar_lea.vmem %s3, %s698
        %s700 = smul.u32 8, %s19
        %v702 = vld [vmem:[%s648] sm:$0xff]
        %v703 = vld [vmem:[%s648 + $0x8] sm:$0xff]
        %v704 = vld [vmem:[%s648 + $0x10] sm:$0xff]
        %v705 = vld [vmem:[%s648 + $0x18] sm:$0xff]
        %v706 = vld [vmem:[%s648 + $0x20] sm:$0xff]
        %v707 = vld [vmem:[%s648 + $0x28] sm:$0xff]
        %v708 = vld [vmem:[%s648 + $0x30] sm:$0xff]
        %v709 = vld [vmem:[%s648 + $0x38] sm:$0xff]
        %710 = vst [vmem:[#allocation2] sm:$0xff] %v702
        %711 = vst [vmem:[#allocation2 + $0x8] sm:$0xff] %v703
        %712 = vst [vmem:[#allocation2 + $0x10] sm:$0xff] %v704
        %713 = vst [vmem:[#allocation2 + $0x18] sm:$0xff] %v705
        %714 = vst [vmem:[#allocation2 + $0x20] sm:$0xff] %v706
        %715 = vst [vmem:[#allocation2 + $0x28] sm:$0xff] %v707
        %716 = vst [vmem:[#allocation2 + $0x30] sm:$0xff] %v708
        %717 = vst [vmem:[#allocation2 + $0x38] sm:$0xff] %v709
        %v718 = vld [vmem:[%s648] sm:$0xff]
        %v719 = vld [vmem:[%s648 + $0x8] sm:$0xff]
        %v720 = vld [vmem:[%s648 + $0x10] sm:$0xff]
        %v721 = vld [vmem:[%s648 + $0x18] sm:$0xff]
        %v722 = vld [vmem:[%s648 + $0x20] sm:$0xff]
        %v723 = vld [vmem:[%s648 + $0x28] sm:$0xff]
        %v724 = vld [vmem:[%s648 + $0x30] sm:$0xff]
        %v725 = vld [vmem:[%s648 + $0x38] sm:$0xff]
        %734 = vrot.lane.b32.xlu0 %v718, 127
        %v735 = vpop.permute.xlu0 %734
        %736 = vrot.lane.b32.xlu0 %v719, 127
        %v737 = vpop.permute.xlu0 %736
        %738 = vrot.lane.b32.xlu0 %v720, 127
        %v739 = vpop.permute.xlu0 %738
        %740 = vrot.lane.b32.xlu0 %v721, 127
        %v741 = vpop.permute.xlu0 %740
        %742 = vrot.lane.b32.xlu0 %v722, 127
        %v743 = vpop.permute.xlu0 %742
        %744 = vrot.lane.b32.xlu0 %v723, 127
        %v745 = vpop.permute.xlu0 %744
        %746 = vrot.lane.b32.xlu0 %v724, 127
        %v747 = vpop.permute.xlu0 %746
        %748 = vrot.lane.b32.xlu0 %v725, 127
        %v749 = vpop.permute.xlu0 %748
        %v750 = vrot.slane %v735, 4
        %v751 = vrot.slane %v737, 4
        %v752 = vrot.slane %v739, 4
        %v753 = vrot.slane %v741, 4
        %v754 = vrot.slane %v743, 4
        %v755 = vrot.slane %v745, 4
        %v756 = vrot.slane %v747, 4
        %v757 = vrot.slane %v749, 4
        %vm758 = vcmask 1043456
        %v759 = vsel %vm758, %v750, %v751
        %vm760 = vcmask 1039360
        %v761 = vsel %vm760, %v735, %v759
        %v762 = vsel %vm758, %v751, %v752
        %v763 = vsel %vm760, %v737, %v762
        %v764 = vsel %vm758, %v752, %v753
        %v765 = vsel %vm760, %v739, %v764
        %v766 = vsel %vm760, %v741, %v753
        %v767 = vsel %vm758, %v754, %v755
        %v768 = vsel %vm760, %v743, %v767
        %v769 = vsel %vm758, %v755, %v756
        %v770 = vsel %vm760, %v745, %v769
        %v771 = vsel %vm758, %v756, %v757
        %v772 = vsel %vm760, %v747, %v771
        %v773 = vsel %vm760, %v749, %v757
        %782 = vst [vmem:[#allocation2 + $0x40] sm:$0xff] %v761
        %783 = vst [vmem:[#allocation2 + $0x48] sm:$0xff] %v763
        %784 = vst [vmem:[#allocation2 + $0x50] sm:$0xff] %v765
        %vm785 = vcmask 1043456
        %vm786 = vcmask 1039364
        %vm787 = vmor %vm786, %vm785
        %788 = vst.msk [vmem:[#allocation2 + $0x58] sm:$0xff] %vm787, %v766
        %789 = vst [vmem:[#allocation2 + $0x60] sm:$0xff] %v768
        %790 = vst [vmem:[#allocation2 + $0x68] sm:$0xff] %v770
        %791 = vst [vmem:[#allocation2 + $0x70] sm:$0xff] %v772
        %792 = vst.msk [vmem:[#allocation2 + $0x78] sm:$0xff] %vm787, %v773
        %v793 = vld [vmem:[%s655] sm:$0xf]
        %v794 = vld [vmem:[%s655 + $0x4] sm:$0xf]
        %797 = vrot.lane.b32.xlu0 %v793, 127
        %v798 = vpop.permute.xlu0 %797
        %799 = vrot.lane.b32.xlu0 %v794, 127
        %v800 = vpop.permute.xlu0 %799
        %vm803 = vcmask 1044472
        %804 = vst.msk [vmem:[#allocation2 + $0x5c] sm:$0xf] %vm803, %v798
        %805 = vst.msk [vmem:[#allocation2 + $0x7c] sm:$0xf] %vm803, %v800
        %v806 = vld [vmem:[%s648] sm:$0xff]
        %v807 = vld [vmem:[%s648 + $0x8] sm:$0xff]
        %v808 = vld [vmem:[%s648 + $0x10] sm:$0xff]
        %v809 = vld [vmem:[%s648 + $0x18] sm:$0xff]
        %v810 = vld [vmem:[%s648 + $0x20] sm:$0xff]
        %v811 = vld [vmem:[%s648 + $0x28] sm:$0xff]
        %v812 = vld [vmem:[%s648 + $0x30] sm:$0xff]
        %v813 = vld [vmem:[%s648 + $0x38] sm:$0xff]
        %822 = vrot.lane.b32.xlu0 %v806, 126
        %v823 = vpop.permute.xlu0 %822
        %824 = vrot.lane.b32.xlu0 %v807, 126
        %v825 = vpop.permute.xlu0 %824
        %826 = vrot.lane.b32.xlu0 %v808, 126
        %v827 = vpop.permute.xlu0 %826
        %828 = vrot.lane.b32.xlu0 %v809, 126
        %v829 = vpop.permute.xlu0 %828
        %830 = vrot.lane.b32.xlu0 %v810, 126
        %v831 = vpop.permute.xlu0 %830
        %832 = vrot.lane.b32.xlu0 %v811, 126
        %v833 = vpop.permute.xlu0 %832
        %834 = vrot.lane.b32.xlu0 %v812, 126
        %v835 = vpop.permute.xlu0 %834
        %836 = vrot.lane.b32.xlu0 %v813, 126
        %v837 = vpop.permute.xlu0 %836
        %v838 = vrot.slane %v823, 4
        %v839 = vrot.slane %v825, 4
        %v840 = vrot.slane %v827, 4
        %v841 = vrot.slane %v829, 4
        %v842 = vrot.slane %v831, 4
        %v843 = vrot.slane %v833, 4
        %v844 = vrot.slane %v835, 4
        %v845 = vrot.slane %v837, 4
        %v846 = vsel %vm758, %v838, %v839
        %vm847 = vcmask 1031168
        %v848 = vsel %vm847, %v823, %v846
        %v849 = vsel %vm758, %v839, %v840
        %v850 = vsel %vm847, %v825, %v849
        %v851 = vsel %vm758, %v840, %v841
        %v852 = vsel %vm847, %v827, %v851
        %v853 = vsel %vm847, %v829, %v841
        %v854 = vsel %vm758, %v842, %v843
        %v855 = vsel %vm847, %v831, %v854
        %v856 = vsel %vm758, %v843, %v844
        %v857 = vsel %vm847, %v833, %v856
        %v858 = vsel %vm758, %v844, %v845
        %v859 = vsel %vm847, %v835, %v858
        %v860 = vsel %vm847, %v837, %v845
        %869 = vst [vmem:[#allocation2 + $0x80] sm:$0xff] %v848
        %870 = vst [vmem:[#allocation2 + $0x88] sm:$0xff] %v850
        %871 = vst [vmem:[#allocation2 + $0x90] sm:$0xff] %v852
        %vm872 = vcmask 1031172
        %vm873 = vmor %vm872, %vm785
        %874 = vst.msk [vmem:[#allocation2 + $0x98] sm:$0xff] %vm873, %v853
        %875 = vst [vmem:[#allocation2 + $0xa0] sm:$0xff] %v855
        %876 = vst [vmem:[#allocation2 + $0xa8] sm:$0xff] %v857
        %877 = vst [vmem:[#allocation2 + $0xb0] sm:$0xff] %v859
        %878 = vst.msk [vmem:[#allocation2 + $0xb8] sm:$0xff] %vm873, %v860
        %v879 = vld [vmem:[%s655] sm:$0xf]
        %v880 = vld [vmem:[%s655 + $0x4] sm:$0xf]
        %883 = vrot.lane.b32.xlu0 %v879, 126
        %v884 = vpop.permute.xlu0 %883
        %885 = vrot.lane.b32.xlu0 %v880, 126
        %v886 = vpop.permute.xlu0 %885
        %vm889 = vcmask 1044464
        %890 = vst.msk [vmem:[#allocation2 + $0x9c] sm:$0xf] %vm889, %v884
        %891 = vst.msk [vmem:[#allocation2 + $0xbc] sm:$0xf] %vm889, %v886
        %v892 = vld [vmem:[%s648] sm:$0xff]
        %v893 = vld [vmem:[%s648 + $0x8] sm:$0xff]
        %v894 = vld [vmem:[%s648 + $0x10] sm:$0xff]
        %v895 = vld [vmem:[%s648 + $0x18] sm:$0xff]
        %v896 = vld [vmem:[%s648 + $0x20] sm:$0xff]
        %v897 = vld [vmem:[%s648 + $0x28] sm:$0xff]
        %v898 = vld [vmem:[%s648 + $0x30] sm:$0xff]
        %v899 = vld [vmem:[%s648 + $0x38] sm:$0xff]
        %908 = vrot.lane.b32.xlu0 %v892, 110
        %v909 = vpop.permute.xlu0 %908
        %910 = vrot.lane.b32.xlu0 %v893, 110
        %v911 = vpop.permute.xlu0 %910
        %912 = vrot.lane.b32.xlu0 %v894, 110
        %v913 = vpop.permute.xlu0 %912
        %914 = vrot.lane.b32.xlu0 %v895, 110
        %v915 = vpop.permute.xlu0 %914
        %916 = vrot.lane.b32.xlu0 %v896, 110
        %v917 = vpop.permute.xlu0 %916
        %918 = vrot.lane.b32.xlu0 %v897, 110
        %v919 = vpop.permute.xlu0 %918
        %920 = vrot.lane.b32.xlu0 %v898, 110
        %v921 = vpop.permute.xlu0 %920
        %922 = vrot.lane.b32.xlu0 %v899, 110
        %v923 = vpop.permute.xlu0 %922
        %v924 = vrot.slane %v909, 4
        %v925 = vrot.slane %v911, 4
        %v926 = vrot.slane %v913, 4
        %v927 = vrot.slane %v915, 4
        %v928 = vrot.slane %v917, 4
        %v929 = vrot.slane %v919, 4
        %v930 = vrot.slane %v921, 4
        %v931 = vrot.slane %v923, 4
        %v932 = vsel %vm758, %v924, %v925
        %vm933 = vcmask 900096
        %v934 = vsel %vm933, %v909, %v932
        %v935 = vsel %vm758, %v925, %v926
        %v936 = vsel %vm933, %v911, %v935
        %v937 = vsel %vm758, %v926, %v927
        %v938 = vsel %vm933, %v913, %v937
        %v939 = vsel %vm933, %v915, %v927
        %v940 = vsel %vm758, %v928, %v929
        %v941 = vsel %vm933, %v917, %v940
        %v942 = vsel %vm758, %v929, %v930
        %v943 = vsel %vm933, %v919, %v942
        %v944 = vsel %vm758, %v930, %v931
        %v945 = vsel %vm933, %v921, %v944
        %v946 = vsel %vm933, %v923, %v931
        %955 = vst [vmem:[#allocation2 + $0xc0] sm:$0xff] %v934
        %956 = vst [vmem:[#allocation2 + $0xc8] sm:$0xff] %v936
        %957 = vst [vmem:[#allocation2 + $0xd0] sm:$0xff] %v938
        %vm958 = vcmask 900100
        %vm959 = vmor %vm958, %vm785
        %960 = vst.msk [vmem:[#allocation2 + $0xd8] sm:$0xff] %vm959, %v939
        %961 = vst [vmem:[#allocation2 + $0xe0] sm:$0xff] %v941
        %962 = vst [vmem:[#allocation2 + $0xe8] sm:$0xff] %v943
        %963 = vst [vmem:[#allocation2 + $0xf0] sm:$0xff] %v945
        %964 = vst.msk [vmem:[#allocation2 + $0xf8] sm:$0xff] %vm959, %v946
        %v965 = vld [vmem:[%s655] sm:$0xf]
        %v966 = vld [vmem:[%s655 + $0x4] sm:$0xf]
        %969 = vrot.lane.b32.xlu0 %v965, 110
        %v970 = vpop.permute.xlu0 %969
        %971 = vrot.lane.b32.xlu0 %v966, 110
        %v972 = vpop.permute.xlu0 %971
        %vm975 = vcmask 1044336
        %976 = vst.msk [vmem:[#allocation2 + $0xdc] sm:$0xf] %vm975, %v970
        %977 = vst.msk [vmem:[#allocation2 + $0xfc] sm:$0xf] %vm975, %v972
        %v978 = vld [vmem:[%s648] sm:$0xff]
        %v979 = vld [vmem:[%s648 + $0x8] sm:$0xff]
        %v980 = vld [vmem:[%s648 + $0x10] sm:$0xff]
        %v981 = vld [vmem:[%s648 + $0x18] sm:$0xff]
        %v982 = vld [vmem:[%s648 + $0x20] sm:$0xff]
        %v983 = vld [vmem:[%s648 + $0x28] sm:$0xff]
        %v984 = vld [vmem:[%s648 + $0x30] sm:$0xff]
        %v985 = vld [vmem:[%s648 + $0x38] sm:$0xff]
        %994 = vrot.lane.b32.xlu0 %v978, 109
        %v995 = vpop.permute.xlu0 %994
        %996 = vrot.lane.b32.xlu0 %v979, 109
        %v997 = vpop.permute.xlu0 %996
        %998 = vrot.lane.b32.xlu0 %v980, 109
        %v999 = vpop.permute.xlu0 %998
        %1000 = vrot.lane.b32.xlu0 %v981, 109
        %v1001 = vpop.permute.xlu0 %1000
        %1002 = vrot.lane.b32.xlu0 %v982, 109
        %v1003 = vpop.permute.xlu0 %1002
        %1004 = vrot.lane.b32.xlu0 %v983, 109
        %v1005 = vpop.permute.xlu0 %1004
        %1006 = vrot.lane.b32.xlu0 %v984, 109
        %v1007 = vpop.permute.xlu0 %1006
        %1008 = vrot.lane.b32.xlu0 %v985, 109
        %v1009 = vpop.permute.xlu0 %1008
        %v1010 = vrot.slane %v995, 4
        %v1011 = vrot.slane %v997, 4
        %v1012 = vrot.slane %v999, 4
        %v1013 = vrot.slane %v1001, 4
        %v1014 = vrot.slane %v1003, 4
        %v1015 = vrot.slane %v1005, 4
        %v1016 = vrot.slane %v1007, 4
        %v1017 = vrot.slane %v1009, 4
        %v1018 = vsel %vm758, %v1010, %v1011
        %vm1019 = vcmask 891904
        %v1020 = vsel %vm1019, %v995, %v1018
        %v1021 = vsel %vm758, %v1011, %v1012
        %v1022 = vsel %vm1019, %v997, %v1021
        %v1023 = vsel %vm758, %v1012, %v1013
        %v1024 = vsel %vm1019, %v999, %v1023
        %v1025 = vsel %vm1019, %v1001, %v1013
        %v1026 = vsel %vm758, %v1014, %v1015
        %v1027 = vsel %vm1019, %v1003, %v1026
        %v1028 = vsel %vm758, %v1015, %v1016
        %v1029 = vsel %vm1019, %v1005, %v1028
        %v1030 = vsel %vm758, %v1016, %v1017
        %v1031 = vsel %vm1019, %v1007, %v1030
        %v1032 = vsel %vm1019, %v1009, %v1017
        %1041 = vst [vmem:[#allocation2 + $0x100] sm:$0xff] %v1020
        %1042 = vst [vmem:[#allocation2 + $0x108] sm:$0xff] %v1022
        %1043 = vst [vmem:[#allocation2 + $0x110] sm:$0xff] %v1024
        %vm1044 = vcmask 891908
        %vm1045 = vmor %vm1044, %vm785
        %1046 = vst.msk [vmem:[#allocation2 + $0x118] sm:$0xff] %vm1045, %v1025
        %1047 = vst [vmem:[#allocation2 + $0x120] sm:$0xff] %v1027
        %1048 = vst [vmem:[#allocation2 + $0x128] sm:$0xff] %v1029
        %1049 = vst [vmem:[#allocation2 + $0x130] sm:$0xff] %v1031
        %1050 = vst.msk [vmem:[#allocation2 + $0x138] sm:$0xff] %vm1045, %v1032
        %v1051 = vld [vmem:[%s655] sm:$0xf]
        %v1052 = vld [vmem:[%s655 + $0x4] sm:$0xf]
        %1055 = vrot.lane.b32.xlu0 %v1051, 109
        %v1056 = vpop.permute.xlu0 %1055
        %1057 = vrot.lane.b32.xlu0 %v1052, 109
        %v1058 = vpop.permute.xlu0 %1057
        %vm1061 = vcmask 1044328
        %1062 = vst.msk [vmem:[#allocation2 + $0x11c] sm:$0xf] %vm1061, %v1056
        %1063 = vst.msk [vmem:[#allocation2 + $0x13c] sm:$0xf] %vm1061, %v1058
        %v1064 = vld [vmem:[%s648] sm:$0xff]
        %v1065 = vld [vmem:[%s648 + $0x8] sm:$0xff]
        %v1066 = vld [vmem:[%s648 + $0x10] sm:$0xff]
        %v1067 = vld [vmem:[%s648 + $0x18] sm:$0xff]
        %v1068 = vld [vmem:[%s648 + $0x20] sm:$0xff]
        %v1069 = vld [vmem:[%s648 + $0x28] sm:$0xff]
        %v1070 = vld [vmem:[%s648 + $0x30] sm:$0xff]
        %v1071 = vld [vmem:[%s648 + $0x38] sm:$0xff]
        %1080 = vrot.lane.b32.xlu0 %v1064, 108
        %v1081 = vpop.permute.xlu0 %1080
        %1082 = vrot.lane.b32.xlu0 %v1065, 108
        %v1083 = vpop.permute.xlu0 %1082
        %1084 = vrot.lane.b32.xlu0 %v1066, 108
        %v1085 = vpop.permute.xlu0 %1084
        %1086 = vrot.lane.b32.xlu0 %v1067, 108
        %v1087 = vpop.permute.xlu0 %1086
        %1088 = vrot.lane.b32.xlu0 %v1068, 108
        %v1089 = vpop.permute.xlu0 %1088
        %1090 = vrot.lane.b32.xlu0 %v1069, 108
        %v1091 = vpop.permute.xlu0 %1090
        %1092 = vrot.lane.b32.xlu0 %v1070, 108
        %v1093 = vpop.permute.xlu0 %1092
        %1094 = vrot.lane.b32.xlu0 %v1071, 108
        %v1095 = vpop.permute.xlu0 %1094
        %v1096 = vrot.slane %v1081, 4
        %v1097 = vrot.slane %v1083, 4
        %v1098 = vrot.slane %v1085, 4
        %v1099 = vrot.slane %v1087, 4
        %v1100 = vrot.slane %v1089, 4
        %v1101 = vrot.slane %v1091, 4
        %v1102 = vrot.slane %v1093, 4
        %v1103 = vrot.slane %v1095, 4
        %v1104 = vsel %vm758, %v1096, %v1097
        %vm1105 = vcmask 883712
        %v1106 = vsel %vm1105, %v1081, %v1104
        %v1107 = vsel %vm758, %v1097, %v1098
        %v1108 = vsel %vm1105, %v1083, %v1107
        %v1109 = vsel %vm758, %v1098, %v1099
        %v1110 = vsel %vm1105, %v1085, %v1109
        %v1111 = vsel %vm1105, %v1087, %v1099
        %v1112 = vsel %vm758, %v1100, %v1101
        %v1113 = vsel %vm1105, %v1089, %v1112
        %v1114 = vsel %vm758, %v1101, %v1102
        %v1115 = vsel %vm1105, %v1091, %v1114
        %v1116 = vsel %vm758, %v1102, %v1103
        %v1117 = vsel %vm1105, %v1093, %v1116
        %v1118 = vsel %vm1105, %v1095, %v1103
        %1127 = vst [vmem:[#allocation2 + $0x140] sm:$0xff] %v1106
        %1128 = vst [vmem:[#allocation2 + $0x148] sm:$0xff] %v1108
        %1129 = vst [vmem:[#allocation2 + $0x150] sm:$0xff] %v1110
        %vm1130 = vcmask 883716
        %vm1131 = vmor %vm1130, %vm785
        %1132 = vst.msk [vmem:[#allocation2 + $0x158] sm:$0xff] %vm1131, %v1111
        %1133 = vst [vmem:[#allocation2 + $0x160] sm:$0xff] %v1113
        %1134 = vst [vmem:[#allocation2 + $0x168] sm:$0xff] %v1115
        %1135 = vst [vmem:[#allocation2 + $0x170] sm:$0xff] %v1117
        %1136 = vst.msk [vmem:[#allocation2 + $0x178] sm:$0xff] %vm1131, %v1118
        %v1137 = vld [vmem:[%s655] sm:$0xf]
        %v1138 = vld [vmem:[%s655 + $0x4] sm:$0xf]
        %1141 = vrot.lane.b32.xlu0 %v1137, 108
        %v1142 = vpop.permute.xlu0 %1141
        %1143 = vrot.lane.b32.xlu0 %v1138, 108
        %v1144 = vpop.permute.xlu0 %1143
        %vm1147 = vcmask 1044320
        %1148 = vst.msk [vmem:[#allocation2 + $0x15c] sm:$0xf] %vm1147, %v1142
        %1149 = vst.msk [vmem:[#allocation2 + $0x17c] sm:$0xf] %vm1147, %v1144
        %v1150 = vld [vmem:[%s648] sm:$0xff]
        %v1151 = vld [vmem:[%s648 + $0x8] sm:$0xff]
        %v1152 = vld [vmem:[%s648 + $0x10] sm:$0xff]
        %v1153 = vld [vmem:[%s648 + $0x18] sm:$0xff]
        %v1154 = vld [vmem:[%s648 + $0x20] sm:$0xff]
        %v1155 = vld [vmem:[%s648 + $0x28] sm:$0xff]
        %v1156 = vld [vmem:[%s648 + $0x30] sm:$0xff]
        %v1157 = vld [vmem:[%s648 + $0x38] sm:$0xff]
        %1166 = vrot.lane.b32.xlu0 %v1150, 92
        %v1167 = vpop.permute.xlu0 %1166
        %1168 = vrot.lane.b32.xlu0 %v1151, 92
        %v1169 = vpop.permute.xlu0 %1168
        %1170 = vrot.lane.b32.xlu0 %v1152, 92
        %v1171 = vpop.permute.xlu0 %1170
        %1172 = vrot.lane.b32.xlu0 %v1153, 92
        %v1173 = vpop.permute.xlu0 %1172
        %1174 = vrot.lane.b32.xlu0 %v1154, 92
        %v1175 = vpop.permute.xlu0 %1174
        %1176 = vrot.lane.b32.xlu0 %v1155, 92
        %v1177 = vpop.permute.xlu0 %1176
        %1178 = vrot.lane.b32.xlu0 %v1156, 92
        %v1179 = vpop.permute.xlu0 %1178
        %1180 = vrot.lane.b32.xlu0 %v1157, 92
        %v1181 = vpop.permute.xlu0 %1180
        %v1182 = vrot.slane %v1167, 4
        %v1183 = vrot.slane %v1169, 4
        %v1184 = vrot.slane %v1171, 4
        %v1185 = vrot.slane %v1173, 4
        %v1186 = vrot.slane %v1175, 4
        %v1187 = vrot.slane %v1177, 4
        %v1188 = vrot.slane %v1179, 4
        %v1189 = vrot.slane %v1181, 4
        %v1190 = vsel %vm758, %v1182, %v1183
        %vm1191 = vcmask 752640
        %v1192 = vsel %vm1191, %v1167, %v1190
        %v1193 = vsel %vm758, %v1183, %v1184
        %v1194 = vsel %vm1191, %v1169, %v1193
        %v1195 = vsel %vm758, %v1184, %v1185
        %v1196 = vsel %vm1191, %v1171, %v1195
        %v1197 = vsel %vm1191, %v1173, %v1185
        %v1198 = vsel %vm758, %v1186, %v1187
        %v1199 = vsel %vm1191, %v1175, %v1198
        %v1200 = vsel %vm758, %v1187, %v1188
        %v1201 = vsel %vm1191, %v1177, %v1200
        %v1202 = vsel %vm758, %v1188, %v1189
        %v1203 = vsel %vm1191, %v1179, %v1202
        %v1204 = vsel %vm1191, %v1181, %v1189
        %1213 = vst [vmem:[#allocation2 + $0x180] sm:$0xff] %v1192
        %1214 = vst [vmem:[#allocation2 + $0x188] sm:$0xff] %v1194
        %1215 = vst [vmem:[#allocation2 + $0x190] sm:$0xff] %v1196
        %vm1216 = vcmask 752644
        %vm1217 = vmor %vm1216, %vm785
        %1218 = vst.msk [vmem:[#allocation2 + $0x198] sm:$0xff] %vm1217, %v1197
        %1219 = vst [vmem:[#allocation2 + $0x1a0] sm:$0xff] %v1199
        %1220 = vst [vmem:[#allocation2 + $0x1a8] sm:$0xff] %v1201
        %1221 = vst [vmem:[#allocation2 + $0x1b0] sm:$0xff] %v1203
        %1222 = vst.msk [vmem:[#allocation2 + $0x1b8] sm:$0xff] %vm1217, %v1204
        %v1223 = vld [vmem:[%s655] sm:$0xf]
        %v1224 = vld [vmem:[%s655 + $0x4] sm:$0xf]
        %1227 = vrot.lane.b32.xlu0 %v1223, 92
        %v1228 = vpop.permute.xlu0 %1227
        %1229 = vrot.lane.b32.xlu0 %v1224, 92
        %v1230 = vpop.permute.xlu0 %1229
        %vm1233 = vcmask 1044192
        %1234 = vst.msk [vmem:[#allocation2 + $0x19c] sm:$0xf] %vm1233, %v1228
        %1235 = vst.msk [vmem:[#allocation2 + $0x1bc] sm:$0xf] %vm1233, %v1230
        %v1236 = vld [vmem:[%s648] sm:$0xff]
        %v1237 = vld [vmem:[%s648 + $0x8] sm:$0xff]
        %v1238 = vld [vmem:[%s648 + $0x10] sm:$0xff]
        %v1239 = vld [vmem:[%s648 + $0x18] sm:$0xff]
        %v1240 = vld [vmem:[%s648 + $0x20] sm:$0xff]
        %v1241 = vld [vmem:[%s648 + $0x28] sm:$0xff]
        %v1242 = vld [vmem:[%s648 + $0x30] sm:$0xff]
        %v1243 = vld [vmem:[%s648 + $0x38] sm:$0xff]
        %1252 = vrot.lane.b32.xlu0 %v1236, 91
        %v1253 = vpop.permute.xlu0 %1252
        %1254 = vrot.lane.b32.xlu0 %v1237, 91
        %v1255 = vpop.permute.xlu0 %1254
        %1256 = vrot.lane.b32.xlu0 %v1238, 91
        %v1257 = vpop.permute.xlu0 %1256
        %1258 = vrot.lane.b32.xlu0 %v1239, 91
        %v1259 = vpop.permute.xlu0 %1258
        %1260 = vrot.lane.b32.xlu0 %v1240, 91
        %v1261 = vpop.permute.xlu0 %1260
        %1262 = vrot.lane.b32.xlu0 %v1241, 91
        %v1263 = vpop.permute.xlu0 %1262
        %1264 = vrot.lane.b32.xlu0 %v1242, 91
        %v1265 = vpop.permute.xlu0 %1264
        %1266 = vrot.lane.b32.xlu0 %v1243, 91
        %v1267 = vpop.permute.xlu0 %1266
        %v1268 = vrot.slane %v1253, 4
        %v1269 = vrot.slane %v1255, 4
        %v1270 = vrot.slane %v1257, 4
        %v1271 = vrot.slane %v1259, 4
        %v1272 = vrot.slane %v1261, 4
        %v1273 = vrot.slane %v1263, 4
        %v1274 = vrot.slane %v1265, 4
        %v1275 = vrot.slane %v1267, 4
        %v1276 = vsel %vm758, %v1268, %v1269
        %vm1277 = vcmask 744448
        %v1278 = vsel %vm1277, %v1253, %v1276
        %v1279 = vsel %vm758, %v1269, %v1270
        %v1280 = vsel %vm1277, %v1255, %v1279
        %v1281 = vsel %vm758, %v1270, %v1271
        %v1282 = vsel %vm1277, %v1257, %v1281
        %v1283 = vsel %vm1277, %v1259, %v1271
        %v1284 = vsel %vm758, %v1272, %v1273
        %v1285 = vsel %vm1277, %v1261, %v1284
        %v1286 = vsel %vm758, %v1273, %v1274
        %v1287 = vsel %vm1277, %v1263, %v1286
        %v1288 = vsel %vm758, %v1274, %v1275
        %v1289 = vsel %vm1277, %v1265, %v1288
        %v1290 = vsel %vm1277, %v1267, %v1275
        %1299 = vst [vmem:[#allocation2 + $0x1c0] sm:$0xff] %v1278
        %1300 = vst [vmem:[#allocation2 + $0x1c8] sm:$0xff] %v1280
        %1301 = vst [vmem:[#allocation2 + $0x1d0] sm:$0xff] %v1282
        %vm1302 = vcmask 744452
        %vm1303 = vmor %vm1302, %vm785
        %1304 = vst.msk [vmem:[#allocation2 + $0x1d8] sm:$0xff] %vm1303, %v1283
        %1305 = vst [vmem:[#allocation2 + $0x1e0] sm:$0xff] %v1285
        %1306 = vst [vmem:[#allocation2 + $0x1e8] sm:$0xff] %v1287
        %1307 = vst [vmem:[#allocation2 + $0x1f0] sm:$0xff] %v1289
        %1308 = vst.msk [vmem:[#allocation2 + $0x1f8] sm:$0xff] %vm1303, %v1290
        %v1309 = vld [vmem:[%s655] sm:$0xf]
        %v1310 = vld [vmem:[%s655 + $0x4] sm:$0xf]
        %1313 = vrot.lane.b32.xlu0 %v1309, 91
        %v1314 = vpop.permute.xlu0 %1313
        %1315 = vrot.lane.b32.xlu0 %v1310, 91
        %v1316 = vpop.permute.xlu0 %1315
        %vm1319 = vcmask 1044184
        %1320 = vst.msk [vmem:[#allocation2 + $0x1dc] sm:$0xf] %vm1319, %v1314
        %1321 = vst.msk [vmem:[#allocation2 + $0x1fc] sm:$0xf] %vm1319, %v1316
        %v1322 = vld [vmem:[%s648] sm:$0xff]
        %v1323 = vld [vmem:[%s648 + $0x8] sm:$0xff]
        %v1324 = vld [vmem:[%s648 + $0x10] sm:$0xff]
        %v1325 = vld [vmem:[%s648 + $0x18] sm:$0xff]
        %v1326 = vld [vmem:[%s648 + $0x20] sm:$0xff]
        %v1327 = vld [vmem:[%s648 + $0x28] sm:$0xff]
        %v1328 = vld [vmem:[%s648 + $0x30] sm:$0xff]
        %v1329 = vld [vmem:[%s648 + $0x38] sm:$0xff]
        %1338 = vrot.lane.b32.xlu0 %v1322, 90
        %v1339 = vpop.permute.xlu0 %1338
        %1340 = vrot.lane.b32.xlu0 %v1323, 90
        %v1341 = vpop.permute.xlu0 %1340
        %1342 = vrot.lane.b32.xlu0 %v1324, 90
        %v1343 = vpop.permute.xlu0 %1342
        %1344 = vrot.lane.b32.xlu0 %v1325, 90
        %v1345 = vpop.permute.xlu0 %1344
        %1346 = vrot.lane.b32.xlu0 %v1326, 90
        %v1347 = vpop.permute.xlu0 %1346
        %1348 = vrot.lane.b32.xlu0 %v1327, 90
        %v1349 = vpop.permute.xlu0 %1348
        %1350 = vrot.lane.b32.xlu0 %v1328, 90
        %v1351 = vpop.permute.xlu0 %1350
        %1352 = vrot.lane.b32.xlu0 %v1329, 90
        %v1353 = vpop.permute.xlu0 %1352
        %v1354 = vrot.slane %v1339, 4
        %v1355 = vrot.slane %v1341, 4
        %v1356 = vrot.slane %v1343, 4
        %v1357 = vrot.slane %v1345, 4
        %v1358 = vrot.slane %v1347, 4
        %v1359 = vrot.slane %v1349, 4
        %v1360 = vrot.slane %v1351, 4
        %v1361 = vrot.slane %v1353, 4
        %v1362 = vsel %vm758, %v1354, %v1355
        %vm1363 = vcmask 736256
        %v1364 = vsel %vm1363, %v1339, %v1362
        %v1365 = vsel %vm758, %v1355, %v1356
        %v1366 = vsel %vm1363, %v1341, %v1365
        %v1367 = vsel %vm758, %v1356, %v1357
        %v1368 = vsel %vm1363, %v1343, %v1367
        %v1369 = vsel %vm1363, %v1345, %v1357
        %v1370 = vsel %vm758, %v1358, %v1359
        %v1371 = vsel %vm1363, %v1347, %v1370
        %v1372 = vsel %vm758, %v1359, %v1360
        %v1373 = vsel %vm1363, %v1349, %v1372
        %v1374 = vsel %vm758, %v1360, %v1361
        %v1375 = vsel %vm1363, %v1351, %v1374
        %v1376 = vsel %vm1363, %v1353, %v1361
        %1385 = vst [vmem:[#allocation2 + $0x200] sm:$0xff] %v1364
        %1386 = vst [vmem:[#allocation2 + $0x208] sm:$0xff] %v1366
        %1387 = vst [vmem:[#allocation2 + $0x210] sm:$0xff] %v1368
        %vm1388 = vcmask 736260
        %vm1389 = vmor %vm1388, %vm785
        %1390 = vst.msk [vmem:[#allocation2 + $0x218] sm:$0xff] %vm1389, %v1369
        %1391 = vst [vmem:[#allocation2 + $0x220] sm:$0xff] %v1371
        %1392 = vst [vmem:[#allocation2 + $0x228] sm:$0xff] %v1373
        %1393 = vst [vmem:[#allocation2 + $0x230] sm:$0xff] %v1375
        %1394 = vst.msk [vmem:[#allocation2 + $0x238] sm:$0xff] %vm1389, %v1376
        %v1395 = vld [vmem:[%s655] sm:$0xf]
        %v1396 = vld [vmem:[%s655 + $0x4] sm:$0xf]
        %1399 = vrot.lane.b32.xlu0 %v1395, 90
        %v1400 = vpop.permute.xlu0 %1399
        %1401 = vrot.lane.b32.xlu0 %v1396, 90
        %v1402 = vpop.permute.xlu0 %1401
        %vm1405 = vcmask 1044176
        %1406 = vst.msk [vmem:[#allocation2 + $0x21c] sm:$0xf] %vm1405, %v1400
        %1407 = vst.msk [vmem:[#allocation2 + $0x23c] sm:$0xf] %vm1405, %v1402
        %v1408 = vld [vmem:[%s2] sm:$0xff]
        %v1409 = vld [vmem:[#allocation2] sm:$0xff]
        %v1410 = vld [vmem:[#allocation2 + $0x8] sm:$0xff]
        %v1411 = vld [vmem:[#allocation2 + $0x10] sm:$0xff]
        %v1412 = vld [vmem:[#allocation2 + $0x18] sm:$0xff]
        %v1413 = vld [vmem:[#allocation2 + $0x20] sm:$0xff]
        %v1414 = vld [vmem:[#allocation2 + $0x28] sm:$0xff]
        %v1415 = vld [vmem:[#allocation2 + $0x30] sm:$0xff]
        %v1416 = vld [vmem:[#allocation2 + $0x38] sm:$0xff]
        %v1417 = vld [vmem:[#allocation2 + $0x40] sm:$0xff]
        %v1418 = vld [vmem:[#allocation2 + $0x48] sm:$0xff]
        %v1419 = vld [vmem:[#allocation2 + $0x50] sm:$0xff]
        %v1420 = vld [vmem:[#allocation2 + $0x58] sm:$0xff]
        %v1421 = vld [vmem:[#allocation2 + $0x60] sm:$0xff]
        %v1422 = vld [vmem:[#allocation2 + $0x68] sm:$0xff]
        %v1423 = vld [vmem:[#allocation2 + $0x70] sm:$0xff]
        %v1424 = vld [vmem:[#allocation2 + $0x78] sm:$0xff]
        %v1425 = vld [vmem:[#allocation2 + $0x80] sm:$0xff]
        %v1426 = vld [vmem:[#allocation2 + $0x88] sm:$0xff]
        %v1427 = vld [vmem:[#allocation2 + $0x90] sm:$0xff]
        %v1428 = vld [vmem:[#allocation2 + $0x98] sm:$0xff]
        %v1429 = vld [vmem:[#allocation2 + $0xa0] sm:$0xff]
        %v1430 = vld [vmem:[#allocation2 + $0xa8] sm:$0xff]
        %v1431 = vld [vmem:[#allocation2 + $0xb0] sm:$0xff]
        %v1432 = vld [vmem:[#allocation2 + $0xb8] sm:$0xff]
        %v1433 = vld [vmem:[#allocation2 + $0xc0] sm:$0xff]
        %v1434 = vld [vmem:[#allocation2 + $0xc8] sm:$0xff]
        %v1435 = vld [vmem:[#allocation2 + $0xd0] sm:$0xff]
        %v1436 = vld [vmem:[#allocation2 + $0xd8] sm:$0xff]
        %v1437 = vld [vmem:[#allocation2 + $0xe0] sm:$0xff]
        %v1438 = vld [vmem:[#allocation2 + $0xe8] sm:$0xff]
        %v1439 = vld [vmem:[#allocation2 + $0xf0] sm:$0xff]
        %v1440 = vld [vmem:[#allocation2 + $0xf8] sm:$0xff]
        %v1441 = vld [vmem:[#allocation2 + $0x100] sm:$0xff]
        %v1442 = vld [vmem:[#allocation2 + $0x108] sm:$0xff]
        %v1443 = vld [vmem:[#allocation2 + $0x110] sm:$0xff]
        %v1444 = vld [vmem:[#allocation2 + $0x118] sm:$0xff]
        %v1445 = vld [vmem:[#allocation2 + $0x120] sm:$0xff]
        %v1446 = vld [vmem:[#allocation2 + $0x128] sm:$0xff]
        %v1447 = vld [vmem:[#allocation2 + $0x130] sm:$0xff]
        %v1448 = vld [vmem:[#allocation2 + $0x138] sm:$0xff]
        %v1449 = vld [vmem:[#allocation2 + $0x140] sm:$0xff]
        %v1450 = vld [vmem:[#allocation2 + $0x148] sm:$0xff]
        %v1451 = vld [vmem:[#allocation2 + $0x150] sm:$0xff]
        %v1452 = vld [vmem:[#allocation2 + $0x158] sm:$0xff]
        %v1453 = vld [vmem:[#allocation2 + $0x160] sm:$0xff]
        %v1454 = vld [vmem:[#allocation2 + $0x168] sm:$0xff]
        %v1455 = vld [vmem:[#allocation2 + $0x170] sm:$0xff]
        %v1456 = vld [vmem:[#allocation2 + $0x178] sm:$0xff]
        %v1457 = vld [vmem:[#allocation2 + $0x180] sm:$0xff]
        %v1458 = vld [vmem:[#allocation2 + $0x188] sm:$0xff]
        %v1459 = vld [vmem:[#allocation2 + $0x190] sm:$0xff]
        %v1460 = vld [vmem:[#allocation2 + $0x198] sm:$0xff]
        %v1461 = vld [vmem:[#allocation2 + $0x1a0] sm:$0xff]
        %v1462 = vld [vmem:[#allocation2 + $0x1a8] sm:$0xff]
        %v1463 = vld [vmem:[#allocation2 + $0x1b0] sm:$0xff]
        %v1464 = vld [vmem:[#allocation2 + $0x1b8] sm:$0xff]
        %v1465 = vld [vmem:[#allocation2 + $0x1c0] sm:$0xff]
        %v1466 = vld [vmem:[#allocation2 + $0x1c8] sm:$0xff]
        %v1467 = vld [vmem:[#allocation2 + $0x1d0] sm:$0xff]
        %v1468 = vld [vmem:[#allocation2 + $0x1d8] sm:$0xff]
        %v1469 = vld [vmem:[#allocation2 + $0x1e0] sm:$0xff]
        %v1470 = vld [vmem:[#allocation2 + $0x1e8] sm:$0xff]
        %v1471 = vld [vmem:[#allocation2 + $0x1f0] sm:$0xff]
        %v1472 = vld [vmem:[#allocation2 + $0x1f8] sm:$0xff]
        %v1473 = vld [vmem:[#allocation2 + $0x200] sm:$0xff]
        %v1474 = vld [vmem:[#allocation2 + $0x208] sm:$0xff]
        %v1475 = vld [vmem:[#allocation2 + $0x210] sm:$0xff]
        %v1476 = vld [vmem:[#allocation2 + $0x218] sm:$0xff]
        %v1477 = vld [vmem:[#allocation2 + $0x220] sm:$0xff]
        %v1478 = vld [vmem:[#allocation2 + $0x228] sm:$0xff]
        %v1479 = vld [vmem:[#allocation2 + $0x230] sm:$0xff]
        %v1480 = vld [vmem:[#allocation2 + $0x238] sm:$0xff]
        %v1482 = vunpack.c.l.b16 %v1408
        %v1483 = vunpack.c.h.b16 %v1408
        %v1484 = vpack.c.b16 %v1482, %v1482
        %v1485 = vpack.c.b16 %v1483, %v1483
        %v1559 = vunpack.c.l.b16 %v1409
        %v1560 = vunpack.c.h.b16 %v1409
        %v1561 = vunpack.c.l.b16 %v1410
        %v1562 = vunpack.c.h.b16 %v1410
        %v1563 = vunpack.c.l.b16 %v1411
        %v1564 = vunpack.c.h.b16 %v1411
        %v1565 = vunpack.c.l.b16 %v1412
        %v1566 = vunpack.c.h.b16 %v1412
        %v1567 = vunpack.c.l.b16 %v1413
        %v1568 = vunpack.c.h.b16 %v1413
        %v1569 = vunpack.c.l.b16 %v1414
        %v1570 = vunpack.c.h.b16 %v1414
        %v1571 = vunpack.c.l.b16 %v1415
        %v1572 = vunpack.c.h.b16 %v1415
        %v1573 = vunpack.c.l.b16 %v1416
        %v1574 = vunpack.c.h.b16 %v1416
        %v1575 = vunpack.c.l.b16 %v1417
        %v1576 = vunpack.c.h.b16 %v1417
        %v1577 = vunpack.c.l.b16 %v1418
        %v1578 = vunpack.c.h.b16 %v1418
        %v1579 = vunpack.c.l.b16 %v1419
        %v1580 = vunpack.c.h.b16 %v1419
        %v1581 = vunpack.c.l.b16 %v1420
        %v1582 = vunpack.c.h.b16 %v1420
        %v1583 = vunpack.c.l.b16 %v1421
        %v1584 = vunpack.c.h.b16 %v1421
        %v1585 = vunpack.c.l.b16 %v1422
        %v1586 = vunpack.c.h.b16 %v1422
        %v1587 = vunpack.c.l.b16 %v1423
        %v1588 = vunpack.c.h.b16 %v1423
        %v1589 = vunpack.c.l.b16 %v1424
        %v1590 = vunpack.c.h.b16 %v1424
        %v1591 = vunpack.c.l.b16 %v1425
        %v1592 = vunpack.c.h.b16 %v1425
        %v1593 = vunpack.c.l.b16 %v1426
        %v1594 = vunpack.c.h.b16 %v1426
        %v1595 = vunpack.c.l.b16 %v1427
        %v1596 = vunpack.c.h.b16 %v1427
        %v1597 = vunpack.c.l.b16 %v1428
        %v1598 = vunpack.c.h.b16 %v1428
        %v1599 = vunpack.c.l.b16 %v1429
        %v1600 = vunpack.c.h.b16 %v1429
        %v1601 = vunpack.c.l.b16 %v1430
        %v1602 = vunpack.c.h.b16 %v1430
        %v1603 = vunpack.c.l.b16 %v1431
        %v1604 = vunpack.c.h.b16 %v1431
        %v1605 = vunpack.c.l.b16 %v1432
        %v1606 = vunpack.c.h.b16 %v1432
        %v1607 = vunpack.c.l.b16 %v1433
        %v1608 = vunpack.c.h.b16 %v1433
        %v1609 = vunpack.c.l.b16 %v1434
        %v1610 = vunpack.c.h.b16 %v1434
        %v1611 = vunpack.c.l.b16 %v1435
        %v1612 = vunpack.c.h.b16 %v1435
        %v1613 = vunpack.c.l.b16 %v1436
        %v1614 = vunpack.c.h.b16 %v1436
        %v1615 = vunpack.c.l.b16 %v1437
        %v1616 = vunpack.c.h.b16 %v1437
        %v1617 = vunpack.c.l.b16 %v1438
        %v1618 = vunpack.c.h.b16 %v1438
        %v1619 = vunpack.c.l.b16 %v1439
        %v1620 = vunpack.c.h.b16 %v1439
        %v1621 = vunpack.c.l.b16 %v1440
        %v1622 = vunpack.c.h.b16 %v1440
        %v1623 = vunpack.c.l.b16 %v1441
        %v1624 = vunpack.c.h.b16 %v1441
        %v1625 = vunpack.c.l.b16 %v1442
        %v1626 = vunpack.c.h.b16 %v1442
        %v1627 = vunpack.c.l.b16 %v1443
        %v1628 = vunpack.c.h.b16 %v1443
        %v1629 = vunpack.c.l.b16 %v1444
        %v1630 = vunpack.c.h.b16 %v1444
        %v1631 = vunpack.c.l.b16 %v1445
        %v1632 = vunpack.c.h.b16 %v1445
        %v1633 = vunpack.c.l.b16 %v1446
        %v1634 = vunpack.c.h.b16 %v1446
        %v1635 = vunpack.c.l.b16 %v1447
        %v1636 = vunpack.c.h.b16 %v1447
        %v1637 = vunpack.c.l.b16 %v1448
        %v1638 = vunpack.c.h.b16 %v1448
        %v1639 = vunpack.c.l.b16 %v1449
        %v1640 = vunpack.c.h.b16 %v1449
        %v1641 = vunpack.c.l.b16 %v1450
        %v1642 = vunpack.c.h.b16 %v1450
        %v1643 = vunpack.c.l.b16 %v1451
        %v1644 = vunpack.c.h.b16 %v1451
        %v1645 = vunpack.c.l.b16 %v1452
        %v1646 = vunpack.c.h.b16 %v1452
        %v1647 = vunpack.c.l.b16 %v1453
        %v1648 = vunpack.c.h.b16 %v1453
        %v1649 = vunpack.c.l.b16 %v1454
        %v1650 = vunpack.c.h.b16 %v1454
        %v1651 = vunpack.c.l.b16 %v1455
        %v1652 = vunpack.c.h.b16 %v1455
        %v1653 = vunpack.c.l.b16 %v1456
        %v1654 = vunpack.c.h.b16 %v1456
        %v1655 = vunpack.c.l.b16 %v1457
        %v1656 = vunpack.c.h.b16 %v1457
        %v1657 = vunpack.c.l.b16 %v1458
        %v1658 = vunpack.c.h.b16 %v1458
        %v1659 = vunpack.c.l.b16 %v1459
        %v1660 = vunpack.c.h.b16 %v1459
        %v1661 = vunpack.c.l.b16 %v1460
        %v1662 = vunpack.c.h.b16 %v1460
        %v1663 = vunpack.c.l.b16 %v1461
        %v1664 = vunpack.c.h.b16 %v1461
        %v1665 = vunpack.c.l.b16 %v1462
        %v1666 = vunpack.c.h.b16 %v1462
        %v1667 = vunpack.c.l.b16 %v1463
        %v1668 = vunpack.c.h.b16 %v1463
        %v1669 = vunpack.c.l.b16 %v1464
        %v1670 = vunpack.c.h.b16 %v1464
        %v1671 = vunpack.c.l.b16 %v1465
        %v1672 = vunpack.c.h.b16 %v1465
        %v1673 = vunpack.c.l.b16 %v1466
        %v1674 = vunpack.c.h.b16 %v1466
        %v1675 = vunpack.c.l.b16 %v1467
        %v1676 = vunpack.c.h.b16 %v1467
        %v1677 = vunpack.c.l.b16 %v1468
        %v1678 = vunpack.c.h.b16 %v1468
        %v1679 = vunpack.c.l.b16 %v1469
        %v1680 = vunpack.c.h.b16 %v1469
        %v1681 = vunpack.c.l.b16 %v1470
        %v1682 = vunpack.c.h.b16 %v1470
        %v1683 = vunpack.c.l.b16 %v1471
        %v1684 = vunpack.c.h.b16 %v1471
        %v1685 = vunpack.c.l.b16 %v1472
        %v1686 = vunpack.c.h.b16 %v1472
        %v1687 = vunpack.c.l.b16 %v1473
        %v1688 = vunpack.c.h.b16 %v1473
        %v1689 = vunpack.c.l.b16 %v1474
        %v1690 = vunpack.c.h.b16 %v1474
        %v1691 = vunpack.c.l.b16 %v1475
        %v1692 = vunpack.c.h.b16 %v1475
        %v1693 = vunpack.c.l.b16 %v1476
        %v1694 = vunpack.c.h.b16 %v1476
        %v1695 = vunpack.c.l.b16 %v1477
        %v1696 = vunpack.c.h.b16 %v1477
        %v1697 = vunpack.c.l.b16 %v1478
        %v1698 = vunpack.c.h.b16 %v1478
        %v1699 = vunpack.c.l.b16 %v1479
        %v1700 = vunpack.c.h.b16 %v1479
        %v1701 = vunpack.c.l.b16 %v1480
        %v1702 = vunpack.c.h.b16 %v1480
        %v1703 = vpack.c.b16 %v1567, %v1559
        %v1704 = vpack.c.b16 %v1568, %v1560
        %v1705 = vpack.c.b16 %v1569, %v1561
        %v1706 = vpack.c.b16 %v1570, %v1562
        %v1707 = vpack.c.b16 %v1571, %v1563
        %v1708 = vpack.c.b16 %v1572, %v1564
        %v1709 = vpack.c.b16 %v1573, %v1565
        %v1710 = vpack.c.b16 %v1574, %v1566
        %v1711 = vpack.c.b16 %v1583, %v1575
        %v1712 = vpack.c.b16 %v1584, %v1576
        %v1713 = vpack.c.b16 %v1585, %v1577
        %v1714 = vpack.c.b16 %v1586, %v1578
        %v1715 = vpack.c.b16 %v1587, %v1579
        %v1716 = vpack.c.b16 %v1588, %v1580
        %v1717 = vpack.c.b16 %v1589, %v1581
        %v1718 = vpack.c.b16 %v1590, %v1582
        %v1719 = vpack.c.b16 %v1599, %v1591
        %v1720 = vpack.c.b16 %v1600, %v1592
        %v1721 = vpack.c.b16 %v1601, %v1593
        %v1722 = vpack.c.b16 %v1602, %v1594
        %v1723 = vpack.c.b16 %v1603, %v1595
        %v1724 = vpack.c.b16 %v1604, %v1596
        %v1725 = vpack.c.b16 %v1605, %v1597
        %v1726 = vpack.c.b16 %v1606, %v1598
        %v1727 = vpack.c.b16 %v1615, %v1607
        %v1728 = vpack.c.b16 %v1616, %v1608
        %v1729 = vpack.c.b16 %v1617, %v1609
        %v1730 = vpack.c.b16 %v1618, %v1610
        %v1731 = vpack.c.b16 %v1619, %v1611
        %v1732 = vpack.c.b16 %v1620, %v1612
        %v1733 = vpack.c.b16 %v1621, %v1613
        %v1734 = vpack.c.b16 %v1622, %v1614
        %v1735 = vpack.c.b16 %v1631, %v1623
        %v1736 = vpack.c.b16 %v1632, %v1624
        %v1737 = vpack.c.b16 %v1633, %v1625
        %v1738 = vpack.c.b16 %v1634, %v1626
        %v1739 = vpack.c.b16 %v1635, %v1627
        %v1740 = vpack.c.b16 %v1636, %v1628
        %v1741 = vpack.c.b16 %v1637, %v1629
        %v1742 = vpack.c.b16 %v1638, %v1630
        %v1743 = vpack.c.b16 %v1647, %v1639
        %v1744 = vpack.c.b16 %v1648, %v1640
        %v1745 = vpack.c.b16 %v1649, %v1641
        %v1746 = vpack.c.b16 %v1650, %v1642
        %v1747 = vpack.c.b16 %v1651, %v1643
        %v1748 = vpack.c.b16 %v1652, %v1644
        %v1749 = vpack.c.b16 %v1653, %v1645
        %v1750 = vpack.c.b16 %v1654, %v1646
        %v1751 = vpack.c.b16 %v1663, %v1655
        %v1752 = vpack.c.b16 %v1664, %v1656
        %v1753 = vpack.c.b16 %v1665, %v1657
        %v1754 = vpack.c.b16 %v1666, %v1658
        %v1755 = vpack.c.b16 %v1667, %v1659
        %v1756 = vpack.c.b16 %v1668, %v1660
        %v1757 = vpack.c.b16 %v1669, %v1661
        %v1758 = vpack.c.b16 %v1670, %v1662
        %v1759 = vpack.c.b16 %v1679, %v1671
        %v1760 = vpack.c.b16 %v1680, %v1672
        %v1761 = vpack.c.b16 %v1681, %v1673
        %v1762 = vpack.c.b16 %v1682, %v1674
        %v1763 = vpack.c.b16 %v1683, %v1675
        %v1764 = vpack.c.b16 %v1684, %v1676
        %v1765 = vpack.c.b16 %v1685, %v1677
        %v1766 = vpack.c.b16 %v1686, %v1678
        %v1767 = vpack.c.b16 %v1695, %v1687
        %v1768 = vpack.c.b16 %v1696, %v1688
        %v1769 = vpack.c.b16 %v1697, %v1689
        %v1770 = vpack.c.b16 %v1698, %v1690
        %v1771 = vpack.c.b16 %v1699, %v1691
        %v1772 = vpack.c.b16 %v1700, %v1692
        %v1773 = vpack.c.b16 %v1701, %v1693
        %v1774 = vpack.c.b16 %v1702, %v1694
        %vm1847 = vcmask 130048
        %v1849 = vsel %vm1847, %v1485, 0
        %1851 = vmatprep.subr.bf16.mxu0 %v1760
        %1852 = vmatpush1.bf16.msra.mxu0 %v1759
        %1853 = vmatprep.subr.bf16.mxu0 %v1752
        %1854 = vmatpush1.bf16.msra.mxu0 %v1751
        %1855 = vmatprep.subr.bf16.mxu0 %v1744
        %1856 = vmatpush1.bf16.msra.mxu0 %v1743
        %1857 = vmatprep.subr.bf16.mxu0 %v1736
        %1858 = vmatpush1.bf16.msra.mxu0 %v1735
        %1859 = vmatprep.subr.bf16.mxu0 %v1728
        %1860 = vmatpush1.bf16.msra.mxu0 %v1727
        %1861 = vmatprep.subr.bf16.mxu0 %v1720
        %1862 = vmatpush1.bf16.msra.mxu0 %v1719
        %1863 = vmatprep.subr.bf16.mxu0 %v1712
        %1864 = vmatpush1.bf16.msra.mxu0 %v1711
        %1865 = vmatprep.subr.bf16.mxu0 %v1704
        %1866 = vmatpush1.bf16.msra.mxu0 %v1703
        %1867 = vmatprep.subr.bf16.mxu0 0
        %1868 = vmatpush2.bf16.msra.mxu0 0
        %1869 = vmatprep.subr.bf16.mxu0 0
        %1870 = vmatpush2.bf16.msra.mxu0 0
        %1871 = vmatprep.subr.bf16.mxu0 0
        %1872 = vmatpush2.bf16.msra.mxu0 0
        %1873 = vmatprep.subr.bf16.mxu0 0
        %1874 = vmatpush2.bf16.msra.mxu0 0
        %1875 = vmatprep.subr.bf16.mxu0 0
        %1876 = vmatpush2.bf16.msra.mxu0 0
        %1877 = vmatprep.subr.bf16.mxu0 0
        %1878 = vmatpush2.bf16.msra.mxu0 0
        %1879 = vmatprep.subr.bf16.mxu0 0
        %1880 = vmatpush2.bf16.msra.mxu0 0
        %1881 = vmatprep.subr.bf16.mxu0 %v1768
        %1882 = vmatpush2.bf16.msra.mxu0 %v1767
        %1883 = vmatprep.mubr.bf16.mxu0 %v1849
        %1884 = vmatmul.mubr.bf16.gmra.mxu0 %v1484
        %v1885 = vpop.f32.mrf.mxu0
        %v1886 = vadd.f32 0.0, %v1885
        %v1887 = vpop.f32.mrf.mxu0
        %v1888 = vadd.f32 0.0, %v1887
        %v1889 = vpop.f32.mrf.mxu0
        %v1890 = vpop.f32.mrf.mxu0
        %1891 = vdwg.mxu0
        %1892 = vmatprep.subr.bf16.mxu0 %v1762
        %1893 = vmatpush1.bf16.msra.mxu0 %v1761
        %1894 = vmatprep.subr.bf16.mxu0 %v1754
        %1895 = vmatpush1.bf16.msra.mxu0 %v1753
        %1896 = vmatprep.subr.bf16.mxu0 %v1746
        %1897 = vmatpush1.bf16.msra.mxu0 %v1745
        %1898 = vmatprep.subr.bf16.mxu0 %v1738
        %1899 = vmatpush1.bf16.msra.mxu0 %v1737
        %1900 = vmatprep.subr.bf16.mxu0 %v1730
        %1901 = vmatpush1.bf16.msra.mxu0 %v1729
        %1902 = vmatprep.subr.bf16.mxu0 %v1722
        %1903 = vmatpush1.bf16.msra.mxu0 %v1721
        %1904 = vmatprep.subr.bf16.mxu0 %v1714
        %1905 = vmatpush1.bf16.msra.mxu0 %v1713
        %1906 = vmatprep.subr.bf16.mxu0 %v1706
        %1907 = vmatpush1.bf16.msra.mxu0 %v1705
        %1908 = vmatprep.subr.bf16.mxu0 0
        %1909 = vmatpush2.bf16.msra.mxu0 0
        %1910 = vmatprep.subr.bf16.mxu0 0
        %1911 = vmatpush2.bf16.msra.mxu0 0
        %1912 = vmatprep.subr.bf16.mxu0 0
        %1913 = vmatpush2.bf16.msra.mxu0 0
        %1914 = vmatprep.subr.bf16.mxu0 0
        %1915 = vmatpush2.bf16.msra.mxu0 0
        %1916 = vmatprep.subr.bf16.mxu0 0
        %1917 = vmatpush2.bf16.msra.mxu0 0
        %1918 = vmatprep.subr.bf16.mxu0 0
        %1919 = vmatpush2.bf16.msra.mxu0 0
        %1920 = vmatprep.subr.bf16.mxu0 0
        %1921 = vmatpush2.bf16.msra.mxu0 0
        %1922 = vmatprep.subr.bf16.mxu0 %v1770
        %1923 = vmatpush2.bf16.msra.mxu0 %v1769
        %1924 = vmatprep.mubr.bf16.mxu0 %v1849
        %1925 = vmatmul.mubr.bf16.gmra.mxu0 %v1484
        %v1926 = vpop.f32.mrf.mxu0
        %v1927 = vadd.f32 0.0, %v1926
        %v1928 = vpop.f32.mrf.mxu0
        %v1929 = vadd.f32 0.0, %v1928
        %v1930 = vpop.f32.mrf.mxu0
        %v1931 = vpop.f32.mrf.mxu0
        %1932 = vdwg.mxu0
        %1933 = vmatprep.subr.bf16.mxu0 %v1764
        %1934 = vmatpush1.bf16.msra.mxu0 %v1763
        %1935 = vmatprep.subr.bf16.mxu0 %v1756
        %1936 = vmatpush1.bf16.msra.mxu0 %v1755
        %1937 = vmatprep.subr.bf16.mxu0 %v1748
        %1938 = vmatpush1.bf16.msra.mxu0 %v1747
        %1939 = vmatprep.subr.bf16.mxu0 %v1740
        %1940 = vmatpush1.bf16.msra.mxu0 %v1739
        %1941 = vmatprep.subr.bf16.mxu0 %v1732
        %1942 = vmatpush1.bf16.msra.mxu0 %v1731
        %1943 = vmatprep.subr.bf16.mxu0 %v1724
        %1944 = vmatpush1.bf16.msra.mxu0 %v1723
        %1945 = vmatprep.subr.bf16.mxu0 %v1716
        %1946 = vmatpush1.bf16.msra.mxu0 %v1715
        %1947 = vmatprep.subr.bf16.mxu0 %v1708
        %1948 = vmatpush1.bf16.msra.mxu0 %v1707
        %1949 = vmatprep.subr.bf16.mxu0 0
        %1950 = vmatpush2.bf16.msra.mxu0 0
        %1951 = vmatprep.subr.bf16.mxu0 0
        %1952 = vmatpush2.bf16.msra.mxu0 0
        %1953 = vmatprep.subr.bf16.mxu0 0
        %1954 = vmatpush2.bf16.msra.mxu0 0
        %1955 = vmatprep.subr.bf16.mxu0 0
        %1956 = vmatpush2.bf16.msra.mxu0 0
        %1957 = vmatprep.subr.bf16.mxu0 0
        %1958 = vmatpush2.bf16.msra.mxu0 0
        %1959 = vmatprep.subr.bf16.mxu0 0
        %1960 = vmatpush2.bf16.msra.mxu0 0
        %1961 = vmatprep.subr.bf16.mxu0 0
        %1962 = vmatpush2.bf16.msra.mxu0 0
        %1963 = vmatprep.subr.bf16.mxu0 %v1772
        %1964 = vmatpush2.bf16.msra.mxu0 %v1771
        %1965 = vmatprep.mubr.bf16.mxu0 %v1849
        %1966 = vmatmul.mubr.bf16.gmra.mxu0 %v1484
        %v1967 = vpop.f32.mrf.mxu0
        %v1968 = vadd.f32 0.0, %v1967
        %v1969 = vpop.f32.mrf.mxu0
        %v1970 = vadd.f32 0.0, %v1969
        %v1971 = vpop.f32.mrf.mxu0
        %v1972 = vpop.f32.mrf.mxu0
        %1973 = vdwg.mxu0
        %1974 = vmatprep.subr.bf16.mxu0 %v1766
        %1975 = vmatpush1.bf16.msra.mxu0 %v1765
        %1976 = vmatprep.subr.bf16.mxu0 %v1758
        %1977 = vmatpush1.bf16.msra.mxu0 %v1757
        %1978 = vmatprep.subr.bf16.mxu0 %v1750
        %1979 = vmatpush1.bf16.msra.mxu0 %v1749
        %1980 = vmatprep.subr.bf16.mxu0 %v1742
        %1981 = vmatpush1.bf16.msra.mxu0 %v1741
        %1982 = vmatprep.subr.bf16.mxu0 %v1734
        %1983 = vmatpush1.bf16.msra.mxu0 %v1733
        %1984 = vmatprep.subr.bf16.mxu0 %v1726
        %1985 = vmatpush1.bf16.msra.mxu0 %v1725
        %1986 = vmatprep.subr.bf16.mxu0 %v1718
        %1987 = vmatpush1.bf16.msra.mxu0 %v1717
        %1988 = vmatprep.subr.bf16.mxu0 %v1710
        %1989 = vmatpush1.bf16.msra.mxu0 %v1709
        %1990 = vmatprep.subr.bf16.mxu0 0
        %1991 = vmatpush2.bf16.msra.mxu0 0
        %1992 = vmatprep.subr.bf16.mxu0 0
        %1993 = vmatpush2.bf16.msra.mxu0 0
        %1994 = vmatprep.subr.bf16.mxu0 0
        %1995 = vmatpush2.bf16.msra.mxu0 0
        %1996 = vmatprep.subr.bf16.mxu0 0
        %1997 = vmatpush2.bf16.msra.mxu0 0
        %1998 = vmatprep.subr.bf16.mxu0 0
        %1999 = vmatpush2.bf16.msra.mxu0 0
        %2000 = vmatprep.subr.bf16.mxu0 0
        %2001 = vmatpush2.bf16.msra.mxu0 0
        %2002 = vmatprep.subr.bf16.mxu0 0
        %2003 = vmatpush2.bf16.msra.mxu0 0
        %2004 = vmatprep.subr.bf16.mxu0 %v1774
        %2005 = vmatpush2.bf16.msra.mxu0 %v1773
        %2006 = vmatprep.mubr.bf16.mxu0 %v1849
        %2007 = vmatmul.mubr.bf16.gmra.mxu0 %v1484
        %v2008 = vpop.f32.mrf.mxu0
        %v2009 = vadd.f32 0.0, %v2008
        %v2010 = vpop.f32.mrf.mxu0
        %v2011 = vadd.f32 0.0, %v2010
        %v2012 = vpop.f32.mrf.mxu0
        %v2013 = vpop.f32.mrf.mxu0
        %2014 = vdwg.mxu0
        %2015 = vst [vmem:[%s699] sm:$0xff] %v1886
        %2016 = vst [vmem:[%s699 + $0x8] sm:$0xff] %v1888
        %2017 = vst [vmem:[%s699 + $0x10] sm:$0xff] %v1927
        %2018 = vst [vmem:[%s699 + $0x18] sm:$0xff] %v1929
        %2019 = vst [vmem:[%s699 + $0x20] sm:$0xff] %v1968
        %2020 = vst [vmem:[%s699 + $0x28] sm:$0xff] %v1970
        %2021 = vst [vmem:[%s699 + $0x30] sm:$0xff] %v2009
        %2022 = vst [vmem:[%s699 + $0x38] sm:$0xff] %v2011
        %s2023 = smul.u32 8, %s19
        %p2024 = scmp.lt.s32.totalorder %s18, 1
        %s2025 = scalar_select %p2024, %s18, 1
        %p2026 = scmp.lt.s32.totalorder %s2023, 7
        %s2027 = scalar_select %p2026, %s2023, 7
        %s2028 = smul.addr %s2025, 8
        %s2029 = sadd.s32 %s2027, %s2028
        %s2030 = smul.addr %s2029, 8
        %s2031 = scalar_lea.vmem %s3, %s2030
        // Predicated region
        $region140: #{upsample_forward.1} parent=130 // pred_check
          %p2032 = pneg %p127
        $region141: #{upsample_forward.1} parent=130 // pred_check_branch
          %2034 = sbr.rel (%p2032) target = $region143
        $region142: #{upsample_forward.1} parent=130 // pred_region
          %s2035 = smul.u32 8, %s19
        $region143: #{upsample_forward.1} parent=130 // pred_fallthru
          _
      $region131: #{upsample_forward.1} parent=5 // pred_fallthru
        _
      %p2036 = scmp.le.s32.totalorder 2, %s9
      // Predicated region
      $region144: #{upsample_forward.1} parent=5 // pred_check
        %p2037 = pneg %p2036
      $region145: #{upsample_forward.1} parent=5 // pred_check_branch
        %2039 = sbr.rel (%p2037) target = $region147
      $region146: #{upsample_forward.1} parent=5 // pred_region
        %s2040 = ssub.s32 %s9, 2
        // Predicated region
        $region148: #{upsample_forward.1} parent=146 // pred_check
          %p2041 = pneg %p133
        $region149: #{upsample_forward.1} parent=146 // pred_check_branch
          %2043 = sbr.rel (%p2041) target = $region151
        $region150: #{upsample_forward.1} parent=146 // pred_region
          %s2044 = smul.u32 8, %s21
          %p2045 = scmp.lt.s32.totalorder %s20, 1
          %s2046 = scalar_select %p2045, %s20, 1
          %p2047 = scmp.lt.s32.totalorder %s2044, 7
          %s2048 = scalar_select %p2047, %s2044, 7
          %s2049 = smul.addr %s2046, 8
          %s2050 = sadd.s32 %s2048, %s2049
          %s2051 = smul.addr %s2050, 8
          %s2052 = scalar_lea.vmem %s3, %s2051
        $region151: #{upsample_forward.1} parent=146 // pred_fallthru
          _
      $region147: #{upsample_forward.1} parent=5 // pred_fallthru
        _
    $region6: #{upsample_forward.1} parent=1 // loop_footer
      %s13 = sadd.s32 1, %s9
    $region7: #{upsample_forward.1} parent=1 // loop_footer_branch
      %8 = sbr.rel target = $region3
    $region8: #{upsample_forward.1} parent=1 // loop_exit
      _

</llo_original>
